<compile_context>
chip_gen: v5e
topology: v5e:2x2
jax: 0.10.0
libtpu: 0.0.40
codegen_flags: <defaults>
</compile_context>

<pallas_src>
import functools

import jax
import jax.numpy as jnp
from jax import lax
from jax.experimental import pallas as pl
from jax.experimental.pallas import tpu as pltpu


def _round_up(n, m):
    return ((n + m - 1) // m) * m


def _pick_h_tile(H, th_req):
    """Largest divisor of H that is <= th_req and a multiple of 128.

    Falls back to the largest plain divisor (tiny test shapes).  Never forces
    the full (D, 2H) gate|up weight into a single VMEM block for large H.
    """
    th_req = max(1, min(th_req, H))
    for cand in range(th_req, 127, -1):
        if cand % 128 == 0 and H % cand == 0:
            return cand
    for cand in range(th_req, 0, -1):
        if H % cand == 0:
            return cand
    return H


def _tuning_for_device():
    """Per-TPU-generation tile / VMEM defaults (from the perf review)."""
    try:
        kind = jax.devices()[0].device_kind.lower()
    except Exception:
        kind = ""
    if "v7" in kind or "7x" in kind:
        # 64 MiB physical VMEM per TC, 2 TCs -> keep headroom below the
        # physical cap and guarantee >= 2 token tiles on the parallel axis.
        return dict(tm=512, th=256, vmem_limit=52 * 1024 * 1024,
                    min_token_tiles=2)
    if "v6" in kind:
        # HBM-bound crossover ~650 flops/byte -> big token tile; 128 MiB VMEM.
        return dict(tm=768, th=1024, vmem_limit=100 * 1024 * 1024,
                    min_token_tiles=1)
    if "v5" in kind:
        # Slowest MXU: tm=256 is already past the roofline crossover; a big
        # th cuts the number of accumulator read-modify-write rounds.
        return dict(tm=256, th=1024, vmem_limit=100 * 1024 * 1024,
                    min_token_tiles=1)
    return dict(tm=384, th=512, vmem_limit=48 * 1024 * 1024,
                min_token_tiles=1)


# ----------------------------------------------------------------------------
# One-time host-side weight repacking (cache the result across forward calls).
# ----------------------------------------------------------------------------
def prepare_lora_moe_weights(raw, *, num_experts, rank, lora_alpha, th, dtype):
    """Repack PyTorch-layout weights into the kernel's streamed layout.

    Call once (e.g. at model-load time) and reuse the result; re-running this
    inside every jitted forward would re-materialize relayouted copies of the
    full frozen weights each call.
    """
    E, R = num_experts, rank
    ER = E * R
    ERp = _round_up(ER, 128)          # pad LoRA-A columns to one MXU lane tile
    H, D = raw["Wg"].shape
    scaling = lora_alpha / rank
    th = _pick_h_tile(H, th)
    nh = H // th

    def cast(w):
        return w.astype(dtype)

    def stack_a(A):      # (E, R, fan_in) -> (fan_in, E*R)
        return A.transpose(2, 0, 1).reshape(A.shape[2], ER)

    def stack_b(Bm):     # (E, fan_out, R) -> (E*R, fan_out), scaling folded in
        return (scaling * Bm.transpose(0, 2, 1)).reshape(ER, Bm.shape[1])

    def htile_cols(Wt):  # (rows, H) -> (nh, rows, th)  (column tiles)
        return Wt.reshape(Wt.shape[0], nh, th).transpose(1, 0, 2)

    wr = cast(raw["Wr"].T)                                   # (D, E)
    br = raw["br"].astype(jnp.float32)[None, :]              # (1, E) f32

    a_gu = cast(jnp.concatenate(
        [stack_a(raw["Ag"]), stack_a(raw["Au"])], axis=1))   # (D, 2*E*R)
    w_gu = cast(jnp.concatenate(
        [htile_cols(raw["Wg"].T), htile_cols(raw["Wu"].T)],
        axis=2))                                             # (nh, D, 2*th)

    bg = htile_cols(stack_b(raw["Bg"]))                      # (nh, ER, th)
    bu = htile_cols(stack_b(raw["Bu"]))
    zer = jnp.zeros_like(bg)
    b_gu = cast(jnp.concatenate(
        [jnp.concatenate([bg, zer], axis=2),
         jnp.concatenate([zer, bu], axis=2)], axis=1))       # (nh, 2*E*R, 2*th)

    # Frozen down rows fused with the down-projection LoRA-A columns.
    wd_t = raw["Wd"].T.reshape(nh, th, D)                    # (nh, th, D)
    ad_t = stack_a(raw["Ad"]).reshape(nh, th, ER)            # (nh, th, ER)
    pad = jnp.zeros((nh, th, ERp - ER), wd_t.dtype)
    wd_fused = cast(jnp.concatenate([wd_t, ad_t, pad], axis=-1))  # (nh,th,D+ERp)

    bd = cast(stack_b(raw["Bd"]))                            # (E*R, D)

    # routing -> per-rank replication (used once per token tile)
    eye_rep = jnp.repeat(jnp.eye(E, dtype=jnp.float32), R, axis=1)   # (E, E*R)
    expand = jnp.concatenate([eye_rep, eye_rep], axis=1)             # (E, 2*E*R)

    return dict(wr=wr, br=br, expand=expand, a_gu=a_gu, w_gu=w_gu, b_gu=b_gu,
                wd_fused=wd_fused, bd=bd,
                num_experts=E, rank=R, d_model=D, mlp_width=H,
                th=th, nh=nh, er_pad=ERp, dtype=dtype)


# ----------------------------------------------------------------------------
# Kernel
# ----------------------------------------------------------------------------
def _lora_moe_ffn_kernel(
    # inputs
    x_ref, wr_ref, br_ref, expand_ref, a_gu_ref, w_gu_ref, b_gu_ref,
    wd_ref, bd_ref,
    # outputs
    out_ref, routing_ref, choice_ref,
    # scratch
    acc_ref, ug_ref, rrep_ref,
    *, num_experts, rank,
):
    E, R = num_experts, rank
    ER = E * R
    j = pl.program_id(1)
    nj = pl.num_programs(1)

    x = x_ref[...]                       # (TM, D) compute dtype (f32/bf16)
    th = w_gu_ref.shape[1] // 2          # H-tile width (w_gu block is (D, 2*th))
    D = out_ref.shape[1]

    # ---- once per token tile: router + LoRA-A projections + accumulator init.
    #      routing/choice output blocks stay VMEM-resident across the j axis,
    #      so they can be written directly here.
    @pl.when(j == 0)
    def _init():
        logits = jnp.dot(x, wr_ref[...],
                         preferred_element_type=jnp.float32) + br_ref[...]
        m = jnp.max(logits, axis=-1, keepdims=True)
        e = jnp.exp(logits - m)
        routing = e / jnp.sum(e, axis=-1, keepdims=True)        # (TM, E) f32
        iota_e = lax.broadcasted_iota(jnp.int32, logits.shape, 1)
        first_idx = jnp.min(jnp.where(logits == m, iota_e, E),
                            axis=-1, keepdims=True)
        routing_ref[...] = routing
        choice_ref[...] = (iota_e == first_idx).astype(jnp.float32)  # one-hot

        # per-rank routing weights, duplicated for the fused gate|up block
        rrep2 = jnp.dot(routing, expand_ref[...],
                        preferred_element_type=jnp.float32)     # (TM, 2*E*R)
        rrep_ref[...] = rrep2[:, :ER]
        # routing-scaled LoRA-A activations, stored once in the compute dtype
        u_gu = jnp.dot(x, a_gu_ref[...],
                       preferred_element_type=jnp.float32)      # (TM, 2*E*R)
        ug_ref[...] = (u_gu * rrep2).astype(ug_ref.dtype)

        acc_ref[...] = jnp.zeros_like(acc_ref)

    # ---- every (token tile, H tile): fused frozen gate|up + block-diagonal
    #      LoRA-B, SiLU(gate)*up, then one fused [frozen-down | down-LoRA-A]
    #      matmul into a single f32 accumulator.
    gu = jnp.dot(x, w_gu_ref[...], preferred_element_type=jnp.float32)
    gu = gu + jnp.dot(ug_ref[...], b_gu_ref[...],
                      preferred_element_type=jnp.float32)       # (TM, 2*th)
    gate = gu[:, :th]
    up = gu[:, th:]
    h = (gate * jax.nn.sigmoid(gate) * up).astype(wd_ref.dtype)  # SiLU(gate)*up
    acc_ref[...] += jnp.dot(h, wd_ref[...], preferred_element_type=jnp.float32)

    # ---- last H tile: apply the down-projection LoRA-B term, write output.
    @pl.when(j == nj - 1)
    def _finalize():
        acc = acc_ref[...]
        u_d = (acc[:, D:D + ER] * rrep_ref[...]).astype(bd_ref.dtype)
        lora_d = jnp.dot(u_d, bd_ref[...], preferred_element_type=jnp.float32)
        out_ref[...] = (acc[:, :D] + lora_d).astype(out_ref.dtype)


# ----------------------------------------------------------------------------
# Wrapper
# ----------------------------------------------------------------------------
def lora_moe_ffn(x, prep, *, tm=None, vmem_limit=None, min_token_tiles=None):
    """x: (B, S, D); prep: output of prepare_lora_moe_weights (cached)."""
    B, S, D = x.shape
    E, R = prep["num_experts"], prep["rank"]
    ER = E * R
    ERp = prep["er_pad"]
    H = prep["mlp_width"]
    th, nh = prep["th"], prep["nh"]
    dtype = prep["dtype"]
    assert D == prep["d_model"]

    tune = _tuning_for_device()
    tm = tune["tm"] if tm is None else tm
    vmem_limit = tune["vmem_limit"] if vmem_limit is None else vmem_limit
    min_token_tiles = (tune["min_token_tiles"] if min_token_tiles is None
                       else min_token_tiles)

    x = x.astype(dtype)

    # ---- token tiling: pad N to a tile multiple (tail rows sliced off later)
    N = B * S
    tm = _round_up(min(tm, _round_up(N, 8)), 8)
    if min_token_tiles > 1:
        # v7x: make sure the "parallel" axis has >= min_token_tiles tiles so
        # both TensorCores get work (no-op on single-TC v5e/v6e).
        tm = min(tm, _round_up(max(8, -(-N // min_token_tiles)), 8))
    Np = _round_up(N, tm)
    n_tok = Np // tm
    xf = x.reshape(N, D)
    if Np != N:
        xf = jnp.pad(xf, ((0, Np - N), (0, 0)))

    kernel = functools.partial(_lora_moe_ffn_kernel, num_experts=E, rank=R)

    # ---- cost estimate (streamed weights are re-fetched once per token tile)
    isz = jnp.dtype(dtype).itemsize
    flops = (2 * Np * D * (2 * H)                      # frozen gate|up
             + 2 * Np * H * (D + ERp)                  # fused frozen+LoRA-A down
             + 2 * Np * D * 2 * ER                     # LoRA-A gate|up
             + 2 * Np * 2 * ER * 2 * H                 # LoRA-B gate|up
             + 2 * Np * ER * D                         # LoRA-B down
             + 2 * Np * D * E + 2 * Np * E * 2 * ER)   # router + rank expand
    streamed = sum(int(a.size) * jnp.dtype(a.dtype).itemsize
                   for a in (prep["w_gu"], prep["b_gu"], prep["wd_fused"]))
    resident = sum(int(a.size) * jnp.dtype(a.dtype).itemsize
                   for a in (prep["wr"], prep["br"], prep["expand"],
                             prep["a_gu"], prep["bd"]))
    bytes_accessed = (int(xf.size) * isz + Np * D * isz + 2 * Np * E * 4
                      + resident + streamed * n_tok)
    cost = pl.CostEstimate(flops=int(flops),
                           transcendentals=int(Np * (H + E)),
                           bytes_accessed=int(bytes_accessed))

    out, routing, choice = pl.pallas_call(
        kernel,
        grid=(n_tok, nh),
        in_specs=[
            pl.BlockSpec((tm, D), lambda i, j: (i, 0)),               # tokens
            pl.BlockSpec((D, E), lambda i, j: (0, 0)),                # router W^T
            pl.BlockSpec((1, E), lambda i, j: (0, 0)),                # router bias
            pl.BlockSpec((E, 2 * ER), lambda i, j: (0, 0)),           # rank expand
            pl.BlockSpec((D, 2 * ER), lambda i, j: (0, 0)),           # LoRA-A gate|up
            pl.BlockSpec((None, D, 2 * th), lambda i, j: (j, 0, 0)),  # frozen gate|up
            pl.BlockSpec((None, 2 * ER, 2 * th), lambda i, j: (j, 0, 0)),  # LoRA-B gu
            pl.BlockSpec((None, th, D + ERp), lambda i, j: (j, 0, 0)),     # down+Ad
            pl.BlockSpec((ER, D), lambda i, j: (0, 0)),               # LoRA-B down
        ],
        out_specs=[
            pl.BlockSpec((tm, D), lambda i, j: (i, 0)),
            pl.BlockSpec((tm, E), lambda i, j: (i, 0)),
            pl.BlockSpec((tm, E), lambda i, j: (i, 0)),
        ],
        out_shape=[
            jax.ShapeDtypeStruct((Np, D), dtype),
            jax.ShapeDtypeStruct((Np, E), jnp.float32),
            jax.ShapeDtypeStruct((Np, E), jnp.float32),
        ],
        scratch_shapes=[
            pltpu.VMEM((tm, D + ERp), jnp.float32),   # fused down accumulator
            pltpu.VMEM((tm, 2 * ER), dtype),          # routing-scaled gate|up LoRA-A
            pltpu.VMEM((tm, ER), jnp.float32),        # per-rank routing weights
        ],
        compiler_params=pltpu.CompilerParams(
            dimension_semantics=("parallel", "arbitrary"),
            vmem_limit_bytes=int(vmem_limit),
        ),
        cost_estimate=cost,
    )(xf, prep["wr"], prep["br"], prep["expand"], prep["a_gu"],
      prep["w_gu"], prep["b_gu"], prep["wd_fused"], prep["bd"])

    out = out[:N].reshape(B, S, D)
    routing = routing[:N].reshape(B, S, E)
    choice = choice[:N].reshape(B, S, E)
    return out, (routing, choice)


# ----------------------------- pure-JAX reference -----------------------------
def ref_forward(x, raw, *, num_experts, rank, lora_alpha):
    scaling = lora_alpha / rank
    logits = jnp.einsum("bsd,ed->bse", x, raw["Wr"]) + raw["br"]
    routing = jax.nn.softmax(logits, axis=-1)
    idx = jnp.argmax(routing, axis=-1)
    y_hard = jax.nn.one_hot(idx, num_experts, dtype=jnp.float32)

    def lora_moe(inp, W, A, B):
        orig = jnp.einsum("bsd,hd->bsh", inp, W)
        t = jnp.einsum("bsd,erd->bser", inp, A)
        lora = jnp.einsum("bser,ehr->bseh", t, B) * scaling
        lora = (lora * routing[..., None]).sum(2)
        return orig + lora

    gate = lora_moe(x, raw["Wg"], raw["Ag"], raw["Bg"])
    up = lora_moe(x, raw["Wu"], raw["Au"], raw["Bu"])
    h = gate * jax.nn.sigmoid(gate) * up
    out = lora_moe(h, raw["Wd"], raw["Ad"], raw["Bd"])
    return out, (routing, y_hard)


if __name__ == "__main__":
    B, S, D, H = 2, 7, 32, 256         # batch, seq, d_model, mlp_width
    E, R, ALPHA = 2, 4, 8              # num_experts, lora_rank, lora_alpha

    key = jax.random.PRNGKey(0)
    ks = jax.random.split(key, 12)
    x = jax.random.normal(ks[0], (B, S, D), jnp.float32)

    # PyTorch layout: Linear.weight = (out, in); LoRA A = (rank, in), B = (out, rank).
    # lora_B is zero-init in the module; nonzero here to exercise the math.
    raw = {
        "Wr": jax.random.normal(ks[1], (E, D), jnp.float32) * 0.1,
        "br": jax.random.normal(ks[2], (E,), jnp.float32) * 0.1,
        "Wg": jax.random.normal(ks[3], (H, D), jnp.float32) * 0.1,
        "Wu": jax.random.normal(ks[4], (H, D), jnp.float32) * 0.1,
        "Wd": jax.random.normal(ks[5], (D, H), jnp.float32) * 0.1,
        "Ag": jax.random.normal(ks[6], (E, R, D), jnp.float32) * 0.1,
        "Bg": jax.random.normal(ks[7], (E, H, R), jnp.float32) * 0.1,
        "Au": jax.random.normal(ks[8], (E, R, D), jnp.float32) * 0.1,
        "Bu": jax.random.normal(ks[9], (E, H, R), jnp.float32) * 0.1,
        "Ad": jax.random.normal(ks[10], (E, R, H), jnp.float32) * 0.1,
        "Bd": jax.random.normal(ks[11], (E, D, R), jnp.float32) * 0.1,
    }

    # One-time weight repack (cache this in real use).  th=128 -> 2 H tiles to
    # exercise the reduction path; N=14 exercises the pad-and-slice tail.
    prep_f32 = prepare_lora_moe_weights(
        raw, num_experts=E, rank=R, lora_alpha=ALPHA, th=128, dtype=jnp.float32)

    out, (routing, choice) = lora_moe_ffn(x, prep_f32)
    jax.block_until_ready(out)

    out_ref, (routing_ref, choice_ref) = ref_forward(
        x, raw, num_experts=E, rank=R, lora_alpha=ALPHA)

    assert jnp.allclose(out, out_ref, rtol=1e-4, atol=2e-4), "output mismatch"
    assert jnp.allclose(routing, routing_ref, rtol=1e-5, atol=1e-5), "routing mismatch"
    assert jnp.allclose(choice, choice_ref, rtol=0, atol=0), "expert_choice mismatch"

    # bf16 smoke run: same kernel, bf16 activations/weights, f32 accumulation.
    prep_bf16 = prepare_lora_moe_weights(
        raw, num_experts=E, rank=R, lora_alpha=ALPHA, th=128, dtype=jnp.bfloat16)
    out_bf, _ = lora_moe_ffn(x.astype(jnp.bfloat16), prep_bf16)
    jax.block_until_ready(out_bf)
    assert jnp.allclose(out_bf.astype(jnp.float32), out_ref,
                        rtol=1e-1, atol=1e-1), "output mismatch (bf16)"

    print("KERNEL_OK")
</pallas_src>

<mosaic_0001>
module attributes {stable_mosaic.version = 11 : i64} {
  func.func @_lora_moe_ffn_kernel(%arg0: i32, %arg1: i32, %arg2: memref<16x32xf32, #tpu.memory_space<vmem>>, %arg3: memref<32x2xf32, #tpu.memory_space<vmem>>, %arg4: memref<1x2xf32, #tpu.memory_space<vmem>>, %arg5: memref<2x16xf32, #tpu.memory_space<vmem>>, %arg6: memref<32x16xf32, #tpu.memory_space<vmem>>, %arg7: memref<1x32x256xf32, #tpu.memory_space<vmem>>, %arg8: memref<1x16x256xf32, #tpu.memory_space<vmem>>, %arg9: memref<1x128x160xf32, #tpu.memory_space<vmem>>, %arg10: memref<8x32xf32, #tpu.memory_space<vmem>>, %arg11: memref<16x32xf32, #tpu.memory_space<vmem>>, %arg12: memref<16x2xf32, #tpu.memory_space<vmem>>, %arg13: memref<16x2xf32, #tpu.memory_space<vmem>>, %arg14: memref<16x160xf32, #tpu.memory_space<vmem>>, %arg15: memref<16x16xf32, #tpu.memory_space<vmem>>, %arg16: memref<16x8xf32, #tpu.memory_space<vmem>>) attributes {dimension_semantics = [#tpu.dimension_semantics<parallel>, #tpu.dimension_semantics<arbitrary>], iteration_bounds = array<i64: 1, 2>, scalar_prefetch = 0 : i64, scratch_operands = 3 : i64, tpu.core_type = #tpu.core_type<tc>, window_params = [{transform_indices = @transform_0, window_bounds = array<i64: 16, 32>}, {pipeline_mode = #tpu.pipeline_mode<synchronous>, transform_indices = @transform_1, window_bounds = array<i64: 32, 2>}, {pipeline_mode = #tpu.pipeline_mode<synchronous>, transform_indices = @transform_2, window_bounds = array<i64: 1, 2>}, {pipeline_mode = #tpu.pipeline_mode<synchronous>, transform_indices = @transform_3, window_bounds = array<i64: 2, 16>}, {pipeline_mode = #tpu.pipeline_mode<synchronous>, transform_indices = @transform_4, window_bounds = array<i64: 32, 16>}, {transform_indices = @transform_5, window_bounds = array<i64: 1, 32, 256>}, {transform_indices = @transform_6, window_bounds = array<i64: 1, 16, 256>}, {transform_indices = @transform_7, window_bounds = array<i64: 1, 128, 160>}, {pipeline_mode = #tpu.pipeline_mode<synchronous>, transform_indices = @transform_8, window_bounds = array<i64: 8, 32>}, {transform_indices = @transform_9, window_bounds = array<i64: 16, 32>}, {transform_indices = @transform_10, window_bounds = array<i64: 16, 2>}, {transform_indices = @transform_11, window_bounds = array<i64: 16, 2>}]} {
    %c0 = arith.constant 0 : index
    %c0_0 = arith.constant 0 : index
    %0 = vector.load %arg2[%c0, %c0_0] : memref<16x32xf32, #tpu.memory_space<vmem>>, vector<16x32xf32>
    %c0_i32 = arith.constant 0 : i32
    %1 = arith.cmpi eq, %arg1, %c0_i32 : i32
    %2 = arith.extui %1 : i1 to i32
    %c0_i32_1 = arith.constant 0 : i32
    %3 = arith.cmpi ne, %2, %c0_i32_1 : i32
    scf.if %3 {
      %c0_21 = arith.constant 0 : index
      %c0_22 = arith.constant 0 : index
      %30 = vector.load %arg3[%c0_21, %c0_22] : memref<32x2xf32, #tpu.memory_space<vmem>>, vector<32x2xf32>
      %cst_23 = arith.constant dense<0.000000e+00> : vector<16x2xf32>
      %31 = tpu.matmul %0, %30, %cst_23 {dimension_numbers = #tpu.dot_dimension_numbers<[1], [0], [0], [1], [0, 0, 1, 1], [], []>} : vector<16x32xf32>, vector<32x2xf32>, vector<16x2xf32> -> vector<16x2xf32>
      %c0_24 = arith.constant 0 : index
      %c0_25 = arith.constant 0 : index
      %32 = vector.load %arg4[%c0_24, %c0_25] : memref<1x2xf32, #tpu.memory_space<vmem>>, vector<1x2xf32>
      %33 = vector.broadcast %32 : vector<1x2xf32> to vector<16x2xf32>
      %34 = arith.addf %31, %33 : vector<16x2xf32>
      %cst_26 = arith.constant dense<0xFF800000> : vector<16xf32>
      %35 = vector.multi_reduction <maximumf>, %34, %cst_26 [1] : vector<16x2xf32> to vector<16xf32>
      %36 = vector.shape_cast %35 : vector<16xf32> to vector<16x1xf32>
      %37 = vector.broadcast %36 : vector<16x1xf32> to vector<16x2xf32>
      %38 = arith.subf %34, %37 : vector<16x2xf32>
      %39 = math.exp %38 : vector<16x2xf32>
      %cst_27 = arith.constant dense<0.000000e+00> : vector<16xf32>
      %40 = vector.multi_reduction <add>, %39, %cst_27 [1] : vector<16x2xf32> to vector<16xf32>
      %41 = vector.shape_cast %40 : vector<16xf32> to vector<16x1xf32>
      %42 = vector.broadcast %41 : vector<16x1xf32> to vector<16x2xf32>
      %43 = arith.divf %39, %42 : vector<16x2xf32>
      %44 = tpu.iota {dimensions = array<i32: 1>} : vector<16x2xi32>
      %45 = vector.broadcast %36 : vector<16x1xf32> to vector<16x2xf32>
      %46 = arith.cmpf oeq, %34, %45 : vector<16x2xf32>
      %c2_i32 = arith.constant 2 : i32
      %47 = vector.broadcast %c2_i32 : i32 to vector<16x2xi32>
      %48 = arith.select %46, %44, %47 : vector<16x2xi1>, vector<16x2xi32>
      %cst_28 = arith.constant dense<2147483647> : vector<16xi32>
      %49 = vector.multi_reduction <minsi>, %48, %cst_28 [1] : vector<16x2xi32> to vector<16xi32>
      %50 = vector.shape_cast %49 : vector<16xi32> to vector<16x1xi32>
      %c0_29 = arith.constant 0 : index
      %c0_30 = arith.constant 0 : index
      %51 = vector.load %arg12[%c0_29, %c0_30] : memref<16x2xf32, #tpu.memory_space<vmem>>, vector<16x2xf32>
      tpu.vector_store %arg12[%c0_29, %c0_30], %43 {strides = array<i32>} : memref<16x2xf32, #tpu.memory_space<vmem>>, vector<16x2xf32>,
      %52 = vector.broadcast %50 : vector<16x1xi32> to vector<16x2xi32>
      %53 = arith.cmpi eq, %44, %52 : vector<16x2xi32>
      %54 = arith.extui %53 : vector<16x2xi1> to vector<16x2xi32>
      %55 = arith.sitofp %54 : vector<16x2xi32> to vector<16x2xf32>
      %c0_31 = arith.constant 0 : index
      %c0_32 = arith.constant 0 : index
      %56 = vector.load %arg13[%c0_31, %c0_32] : memref<16x2xf32, #tpu.memory_space<vmem>>, vector<16x2xf32>
      tpu.vector_store %arg13[%c0_31, %c0_32], %55 {strides = array<i32>} : memref<16x2xf32, #tpu.memory_space<vmem>>, vector<16x2xf32>,
      %c0_33 = arith.constant 0 : index
      %c0_34 = arith.constant 0 : index
      %57 = vector.load %arg5[%c0_33, %c0_34] : memref<2x16xf32, #tpu.memory_space<vmem>>, vector<2x16xf32>
      %cst_35 = arith.constant dense<0.000000e+00> : vector<16x16xf32>
      %58 = tpu.matmul %43, %57, %cst_35 {dimension_numbers = #tpu.dot_dimension_numbers<[1], [0], [0], [1], [0, 0, 1, 1], [], []>} : vector<16x2xf32>, vector<2x16xf32>, vector<16x16xf32> -> vector<16x16xf32>
      %59 = vector.extract_strided_slice %58 {offsets = [0, 0], sizes = [16, 8], strides = [1, 1]} : vector<16x16xf32> to vector<16x8xf32>
      %c0_36 = arith.constant 0 : index
      %c0_37 = arith.constant 0 : index
      %60 = vector.load %arg16[%c0_36, %c0_37] : memref<16x8xf32, #tpu.memory_space<vmem>>, vector<16x8xf32>
      tpu.vector_store %arg16[%c0_36, %c0_37], %59 {strides = array<i32>} : memref<16x8xf32, #tpu.memory_space<vmem>>, vector<16x8xf32>,
      %c0_38 = arith.constant 0 : index
      %c0_39 = arith.constant 0 : index
      %61 = vector.load %arg6[%c0_38, %c0_39] : memref<32x16xf32, #tpu.memory_space<vmem>>, vector<32x16xf32>
      %cst_40 = arith.constant dense<0.000000e+00> : vector<16x16xf32>
      %62 = tpu.matmul %0, %61, %cst_40 {dimension_numbers = #tpu.dot_dimension_numbers<[1], [0], [0], [1], [0, 0, 1, 1], [], []>} : vector<16x32xf32>, vector<32x16xf32>, vector<16x16xf32> -> vector<16x16xf32>
      %63 = arith.mulf %62, %58 : vector<16x16xf32>
      %c0_41 = arith.constant 0 : index
      %c0_42 = arith.constant 0 : index
      %64 = vector.load %arg15[%c0_41, %c0_42] : memref<16x16xf32, #tpu.memory_space<vmem>>, vector<16x16xf32>
      tpu.vector_store %arg15[%c0_41, %c0_42], %63 {strides = array<i32>} : memref<16x16xf32, #tpu.memory_space<vmem>>, vector<16x16xf32>,
      %cst_43 = arith.constant 0.000000e+00 : f32
      %65 = vector.broadcast %cst_43 : f32 to vector<16x160xf32>
      %c0_44 = arith.constant 0 : index
      %c0_45 = arith.constant 0 : index
      %66 = vector.load %arg14[%c0_44, %c0_45] : memref<16x160xf32, #tpu.memory_space<vmem>>, vector<16x160xf32>
      tpu.vector_store %arg14[%c0_44, %c0_45], %65 {strides = array<i32>} : memref<16x160xf32, #tpu.memory_space<vmem>>, vector<16x160xf32>,
    } else {
    }
    %c0_2 = arith.constant 0 : index
    %c0_3 = arith.constant 0 : index
    %c0_4 = arith.constant 0 : index
    %4 = vector.load %arg7[%c0_2, %c0_3, %c0_4] : memref<1x32x256xf32, #tpu.memory_space<vmem>>, vector<1x32x256xf32>
    %5 = vector.shape_cast %4 : vector<1x32x256xf32> to vector<32x256xf32>
    %cst = arith.constant dense<0.000000e+00> : vector<16x256xf32>
    %6 = tpu.matmul %0, %5, %cst {dimension_numbers = #tpu.dot_dimension_numbers<[1], [0], [0], [1], [0, 0, 1, 1], [], []>} : vector<16x32xf32>, vector<32x256xf32>, vector<16x256xf32> -> vector<16x256xf32>
    %c0_5 = arith.constant 0 : index
    %c0_6 = arith.constant 0 : index
    %7 = vector.load %arg15[%c0_5, %c0_6] : memref<16x16xf32, #tpu.memory_space<vmem>>, vector<16x16xf32>
    %c0_7 = arith.constant 0 : index
    %c0_8 = arith.constant 0 : index
    %c0_9 = arith.constant 0 : index
    %8 = vector.load %arg8[%c0_7, %c0_8, %c0_9] : memref<1x16x256xf32, #tpu.memory_space<vmem>>, vector<1x16x256xf32>
    %9 = vector.shape_cast %8 : vector<1x16x256xf32> to vector<16x256xf32>
    %cst_10 = arith.constant dense<0.000000e+00> : vector<16x256xf32>
    %10 = tpu.matmul %7, %9, %cst_10 {dimension_numbers = #tpu.dot_dimension_numbers<[1], [0], [0], [1], [0, 0, 1, 1], [], []>} : vector<16x16xf32>, vector<16x256xf32>, vector<16x256xf32> -> vector<16x256xf32>
    %11 = arith.addf %6, %10 : vector<16x256xf32>
    %12 = vector.extract_strided_slice %11 {offsets = [0, 0], sizes = [16, 128], strides = [1, 1]} : vector<16x256xf32> to vector<16x128xf32>
    %13 = vector.extract_strided_slice %11 {offsets = [0, 128], sizes = [16, 128], strides = [1, 1]} : vector<16x256xf32> to vector<16x128xf32>
    %14 = arith.negf %12 : vector<16x128xf32>
    %15 = math.exp %14 : vector<16x128xf32>
    %cst_11 = arith.constant 1.000000e+00 : f32
    %16 = vector.broadcast %cst_11 : f32 to vector<16x128xf32>
    %17 = arith.addf %16, %15 : vector<16x128xf32>
    %18 = arith.divf %16, %17 : vector<16x128xf32>
    %19 = arith.mulf %12, %18 : vector<16x128xf32>
    %20 = arith.mulf %19, %13 : vector<16x128xf32>
    %c0_12 = arith.constant 0 : index
    %c0_13 = arith.constant 0 : index
    %21 = vector.load %arg14[%c0_12, %c0_13] : memref<16x160xf32, #tpu.memory_space<vmem>>, vector<16x160xf32>
    %c0_14 = arith.constant 0 : index
    %c0_15 = arith.constant 0 : index
    %c0_16 = arith.constant 0 : index
    %22 = vector.load %arg9[%c0_14, %c0_15, %c0_16] : memref<1x128x160xf32, #tpu.memory_space<vmem>>, vector<1x128x160xf32>
    %23 = vector.shape_cast %22 : vector<1x128x160xf32> to vector<128x160xf32>
    %cst_17 = arith.constant dense<0.000000e+00> : vector<16x160xf32>
    %24 = tpu.matmul %20, %23, %cst_17 {dimension_numbers = #tpu.dot_dimension_numbers<[1], [0], [0], [1], [0, 0, 1, 1], [], []>} : vector<16x128xf32>, vector<128x160xf32>, vector<16x160xf32> -> vector<16x160xf32>
    %25 = arith.addf %21, %24 : vector<16x160xf32>
    %c0_18 = arith.constant 0 : index
    %c0_19 = arith.constant 0 : index
    %26 = vector.load %arg14[%c0_18, %c0_19] : memref<16x160xf32, #tpu.memory_space<vmem>>, vector<16x160xf32>
    tpu.vector_store %arg14[%c0_18, %c0_19], %25 {strides = array<i32>} : memref<16x160xf32, #tpu.memory_space<vmem>>, vector<16x160xf32>,
    %c1_i32 = arith.constant 1 : i32
    %27 = arith.cmpi eq, %arg1, %c1_i32 : i32
    %28 = arith.extui %27 : i1 to i32
    %c0_i32_20 = arith.constant 0 : i32
    %29 = arith.cmpi ne, %28, %c0_i32_20 : i32
    scf.if %29 {
      %c0_21 = arith.constant 0 : index
      %c0_22 = arith.constant 0 : index
      %30 = vector.load %arg14[%c0_21, %c0_22] : memref<16x160xf32, #tpu.memory_space<vmem>>, vector<16x160xf32>
      %31 = vector.extract_strided_slice %30 {offsets = [0, 32], sizes = [16, 8], strides = [1, 1]} : vector<16x160xf32> to vector<16x8xf32>
      %c0_23 = arith.constant 0 : index
      %c0_24 = arith.constant 0 : index
      %32 = vector.load %arg16[%c0_23, %c0_24] : memref<16x8xf32, #tpu.memory_space<vmem>>, vector<16x8xf32>
      %33 = arith.mulf %31, %32 : vector<16x8xf32>
      %c0_25 = arith.constant 0 : index
      %c0_26 = arith.constant 0 : index
      %34 = vector.load %arg10[%c0_25, %c0_26] : memref<8x32xf32, #tpu.memory_space<vmem>>, vector<8x32xf32>
      %cst_27 = arith.constant dense<0.000000e+00> : vector<16x32xf32>
      %35 = tpu.matmul %33, %34, %cst_27 {dimension_numbers = #tpu.dot_dimension_numbers<[1], [0], [0], [1], [0, 0, 1, 1], [], []>} : vector<16x8xf32>, vector<8x32xf32>, vector<16x32xf32> -> vector<16x32xf32>
      %36 = vector.extract_strided_slice %30 {offsets = [0, 0], sizes = [16, 32], strides = [1, 1]} : vector<16x160xf32> to vector<16x32xf32>
      %37 = arith.addf %36, %35 : vector<16x32xf32>
      %c0_28 = arith.constant 0 : index
      %c0_29 = arith.constant 0 : index
      %38 = vector.load %arg11[%c0_28, %c0_29] : memref<16x32xf32, #tpu.memory_space<vmem>>, vector<16x32xf32>
      tpu.vector_store %arg11[%c0_28, %c0_29], %37 {strides = array<i32>} : memref<16x32xf32, #tpu.memory_space<vmem>>, vector<16x32xf32>,
    } else {
    }
    return
  }
  func.func @transform_0(%arg0: i32, %arg1: i32) -> (i32, i32) {
    %c0_i32 = arith.constant 0 : i32
    %c0_i32_0 = arith.constant 0 : i32
    return %arg0, %c0_i32 : i32, i32
  }
  func.func @transform_1(%arg0: i32, %arg1: i32) -> (i32, i32) {
    %c0_i32 = arith.constant 0 : i32
    %c0_i32_0 = arith.constant 0 : i32
    %c0_i32_1 = arith.constant 0 : i32
    return %c0_i32, %c0_i32_0 : i32, i32
  }
  func.func @transform_2(%arg0: i32, %arg1: i32) -> (i32, i32) {
    %c0_i32 = arith.constant 0 : i32
    %c0_i32_0 = arith.constant 0 : i32
    %c0_i32_1 = arith.constant 0 : i32
    return %c0_i32, %c0_i32_0 : i32, i32
  }
  func.func @transform_3(%arg0: i32, %arg1: i32) -> (i32, i32) {
    %c0_i32 = arith.constant 0 : i32
    %c0_i32_0 = arith.constant 0 : i32
    %c0_i32_1 = arith.constant 0 : i32
    return %c0_i32, %c0_i32_0 : i32, i32
  }
  func.func @transform_4(%arg0: i32, %arg1: i32) -> (i32, i32) {
    %c0_i32 = arith.constant 0 : i32
    %c0_i32_0 = arith.constant 0 : i32
    %c0_i32_1 = arith.constant 0 : i32
    return %c0_i32, %c0_i32_0 : i32, i32
  }
  func.func @transform_5(%arg0: i32, %arg1: i32) -> (i32, i32, i32) {
    %c0_i32 = arith.constant 0 : i32
    %c0_i32_0 = arith.constant 0 : i32
    %c0_i32_1 = arith.constant 0 : i32
    return %arg1, %c0_i32, %c0_i32_0 : i32, i32, i32
  }
  func.func @transform_6(%arg0: i32, %arg1: i32) -> (i32, i32, i32) {
    %c0_i32 = arith.constant 0 : i32
    %c0_i32_0 = arith.constant 0 : i32
    %c0_i32_1 = arith.constant 0 : i32
    return %arg1, %c0_i32, %c0_i32_0 : i32, i32, i32
  }
  func.func @transform_7(%arg0: i32, %arg1: i32) -> (i32, i32, i32) {
    %c0_i32 = arith.constant 0 : i32
    %c0_i32_0 = arith.constant 0 : i32
    %c0_i32_1 = arith.constant 0 : i32
    return %arg1, %c0_i32, %c0_i32_0 : i32, i32, i32
  }
  func.func @transform_8(%arg0: i32, %arg1: i32) -> (i32, i32) {
    %c0_i32 = arith.constant 0 : i32
    %c0_i32_0 = arith.constant 0 : i32
    %c0_i32_1 = arith.constant 0 : i32
    return %c0_i32, %c0_i32_0 : i32, i32
  }
  func.func @transform_9(%arg0: i32, %arg1: i32) -> (i32, i32) {
    %c0_i32 = arith.constant 0 : i32
    %c0_i32_0 = arith.constant 0 : i32
    return %arg0, %c0_i32 : i32, i32
  }
  func.func @transform_10(%arg0: i32, %arg1: i32) -> (i32, i32) {
    %c0_i32 = arith.constant 0 : i32
    %c0_i32_0 = arith.constant 0 : i32
    return %arg0, %c0_i32 : i32, i32
  }
  func.func @transform_11(%arg0: i32, %arg1: i32) -> (i32, i32) {
    %c0_i32 = arith.constant 0 : i32
    %c0_i32_0 = arith.constant 0 : i32
    return %arg0, %c0_i32 : i32, i32
  }
}

</mosaic_0001>

<llo_original>
// kernel: tpu_custom_call.1
$region0: #{tpu_custom_call.1}
  #allocation0 [shape = 'u32[]', space=smem, size = 0x4, offset = 0x4, fixed_abs, tag = 'smem constant byte address 0x4 - core index']
  #allocation1 [shape = 'u32[72,128]{1,0:T(1,128)}', space=vmem, size = 0x9000, scoped, tag = 'internal scratch']
  #allocation2 [shape = 'f32[16,160]{1,0:T(8,128)}', space=vmem, size = 0x4000, scoped, tag = 'scratch operand']
  #allocation3 [shape = 'f32[16,16]{1,0:T(8,128)}', space=vmem, size = 0x2000, scoped, tag = 'scratch operand']
  #allocation4 [shape = 'f32[16,8]{1,0:T(8,128)}', space=vmem, size = 0x2000, scoped, tag = 'scratch operand']
  %s0 = inlined_call_operand.vmem [shape: f32[16,32], index: 0, kind: input, shape index: {}]
  %s1 = inlined_call_operand.vmem [shape: f32[32,2], index: 1, kind: input, shape index: {}]
  %s2 = inlined_call_operand.vmem [shape: f32[1,2], index: 2, kind: input, shape index: {}]
  %s3 = inlined_call_operand.vmem [shape: f32[2,16], index: 3, kind: input, shape index: {}]
  %s4 = inlined_call_operand.vmem [shape: f32[32,16], index: 4, kind: input, shape index: {}]
  %s5 = inlined_call_operand.vmem [shape: f32[2,32,256], index: 5, kind: input, shape index: {}]
  %s6 = inlined_call_operand.vmem [shape: f32[2,16,256], index: 6, kind: input, shape index: {}]
  %s7 = inlined_call_operand.vmem [shape: f32[2,128,160], index: 7, kind: input, shape index: {}]
  %s8 = inlined_call_operand.vmem [shape: f32[8,32], index: 8, kind: input, shape index: {}]
  %s9 = inlined_call_operand.hbm [shape: f32[16,32], index: 9, kind: output, shape index: {0}]
  %s10 = inlined_call_operand.vmem [shape: f32[16,2], index: 10, kind: output, shape index: {1}]
  %s11 = inlined_call_operand.vmem [shape: f32[16,2], index: 11, kind: output, shape index: {2}]
  %12 = xla_tuple %s9, %s10, %s11
  %s13 = sld [smem:[#allocation0]]
  $region93: #{tpu_custom_call.1} parent=0
    _
  %s15 = ssub.s32 1, %s13
  %s16 = scalar_select 0, %s15, %s13
  $region1: #{tpu_custom_call.1} parent=0
    #allocation5 [shape = 'u8[8192]{0}', space=vmem, size = 0x2000, scoped, tag = 'output window, operand 0, single buffered']
    #allocation6 [shape = 's32[2]{0}', space=sflag, size = 0x8, scoped, tag = 'scoped memory for tpu_custom_call.1']
    %17 = vsyncpa [#allocation6], 0
    loop: start=0, step=1, limit=4
    $region2: #{tpu_custom_call.1} parent=1 // loop_pre_header
      _
    $region3: #{tpu_custom_call.1} parent=1 // loop_header
      %s19 = sphi 0, %s23
      %p20 = scmp.ge.s32.totalorder %s19, 4
      %s26 = sphi 0, %s38
      %s27 = sphi 0, %s34
      %s28 = sphi 0, %s26
      %s29 = sphi 0, %s27
      %s30 = sphi 0, %s28
      %s31 = sphi 0, %s29
      %s41 = sphi 0, %s43
      %s44 = sphi 0, %s41
      %s45 = sphi 0, %s44
      %s61 = sphi 0, %s45
      %s65 = sphi 0, %s65
      %s67 = sphi 0, %s65
      %s68 = sphi 0, %s67
      %s82 = sphi 0, %s68
      %s86 = sphi 0, %s86
      %s88 = sphi 0, %s86
      %s89 = sphi 0, %s88
      %s103 = sphi 0, %s89
      %s107 = sphi 0, %s107
      %s109 = sphi 0, %s107
      %s110 = sphi 0, %s109
      %s124 = sphi 0, %s110
      %s128 = sphi 0, %s128
      %s130 = sphi 0, %s128
      %s131 = sphi 0, %s130
      %s145 = sphi 0, %s131
      %s151 = sphi 0, %s153
      %s154 = sphi 0, %s151
      %s155 = sphi 0, %s154
      %s171 = sphi 0, %s155
      %s177 = sphi 0, %s179
      %s180 = sphi 0, %s177
      %s181 = sphi 0, %s180
      %s197 = sphi 0, %s181
      %s203 = sphi 0, %s205
      %s206 = sphi 0, %s203
      %s207 = sphi 0, %s206
      %s223 = sphi 0, %s207
      %s227 = sphi 0, %s227
      %s229 = sphi 0, %s227
      %s230 = sphi 0, %s229
      %s244 = sphi 0, %s230
      %s250 = sphi 0, %s252
      %s253 = sphi 0, %s250
      %s254 = sphi 0, %s253
      %s270 = sphi 0, %s254
      %s276 = sphi 0, %s278
      %s279 = sphi 0, %s276
      %s280 = sphi 0, %s279
      %s296 = sphi 0, %s280
      %s302 = sphi 0, %s304
      %s305 = sphi 0, %s302
      %s306 = sphi 0, %s305
      %s322 = sphi 0, %s306
    $region4: #{tpu_custom_call.1} parent=1 // loop_header_branch
      %22 = sbr.rel (%p20) target = $region8
    $region5: #{tpu_custom_call.1} parent=1 // loop_body
      %s24 = ssub.s32 %s19, 1
      %s25 = ssub.s32 %s19, 2
      %s32 = sadd.s32 1, %s27
      %p33 = scmp.ge.s32.totalorder %s32, 2
      %s34 = scalar_select %p33, 0, %s32
      %s35 = sadd.s32 1, %s26
      %s36 = scalar_select %p33, %s35, %s26
      %p37 = scmp.ge.s32.totalorder %s36, 1
      %s38 = scalar_select %p37, 0, %s36
      %s39 = ssub.s32 %s26, %s38
      %p40 = scmp.eq.s32.totalorder %s39, 0
      %s42 = sadd.s32 %s41, 1
      %s43 = scalar_select %p40, %s41, %s42
      %p46 = pneg %p40
      %p47 = scmp.eq.s32.totalorder %s19, 1
      %p48 = por %p46, %p47
      %p49 = scmp.ne.s32.totalorder %s41, %s44
      %p50 = scmp.eq.s32.totalorder %s19, 0
      %p51 = por %p49, %p50
      %p52 = scmp.ne.s32.totalorder %s41, %s44
      %p53 = scmp.eq.s32.totalorder %s24, 1
      %p54 = por %p52, %p53
      %p55 = scmp.ne.s32.totalorder %s44, %s45
      %p56 = scmp.eq.s32.totalorder %s24, 0
      %p57 = por %p55, %p56
      %p58 = scmp.ne.s32.totalorder %s44, %s45
      %p59 = scmp.eq.s32.totalorder %s25, 1
      %p60 = por %p58, %p59
      %p62 = scmp.ne.s32.totalorder %s45, %s61
      %p63 = scmp.eq.s32.totalorder %s25, 0
      %p64 = por %p62, %p63
      %s66 = sadd.s32 %s65, 1
      %p69 = scmp.eq.s32.totalorder %s19, 1
      %p70 = scmp.ne.s32.totalorder %s65, %s67
      %p71 = scmp.eq.s32.totalorder %s19, 0
      %p72 = por %p70, %p71
      %p73 = scmp.ne.s32.totalorder %s65, %s67
      %p74 = scmp.eq.s32.totalorder %s24, 1
      %p75 = por %p73, %p74
      %p76 = scmp.ne.s32.totalorder %s67, %s68
      %p77 = scmp.eq.s32.totalorder %s24, 0
      %p78 = por %p76, %p77
      %p79 = scmp.ne.s32.totalorder %s67, %s68
      %p80 = scmp.eq.s32.totalorder %s25, 1
      %p81 = por %p79, %p80
      %p83 = scmp.ne.s32.totalorder %s68, %s82
      %p84 = scmp.eq.s32.totalorder %s25, 0
      %p85 = por %p83, %p84
      %s87 = sadd.s32 %s86, 1
      %p90 = scmp.eq.s32.totalorder %s19, 1
      %p91 = scmp.ne.s32.totalorder %s86, %s88
      %p92 = scmp.eq.s32.totalorder %s19, 0
      %p93 = por %p91, %p92
      %p94 = scmp.ne.s32.totalorder %s86, %s88
      %p95 = scmp.eq.s32.totalorder %s24, 1
      %p96 = por %p94, %p95
      %p97 = scmp.ne.s32.totalorder %s88, %s89
      %p98 = scmp.eq.s32.totalorder %s24, 0
      %p99 = por %p97, %p98
      %p100 = scmp.ne.s32.totalorder %s88, %s89
      %p101 = scmp.eq.s32.totalorder %s25, 1
      %p102 = por %p100, %p101
      %p104 = scmp.ne.s32.totalorder %s89, %s103
      %p105 = scmp.eq.s32.totalorder %s25, 0
      %p106 = por %p104, %p105
      %s108 = sadd.s32 %s107, 1
      %p111 = scmp.eq.s32.totalorder %s19, 1
      %p112 = scmp.ne.s32.totalorder %s107, %s109
      %p113 = scmp.eq.s32.totalorder %s19, 0
      %p114 = por %p112, %p113
      %p115 = scmp.ne.s32.totalorder %s107, %s109
      %p116 = scmp.eq.s32.totalorder %s24, 1
      %p117 = por %p115, %p116
      %p118 = scmp.ne.s32.totalorder %s109, %s110
      %p119 = scmp.eq.s32.totalorder %s24, 0
      %p120 = por %p118, %p119
      %p121 = scmp.ne.s32.totalorder %s109, %s110
      %p122 = scmp.eq.s32.totalorder %s25, 1
      %p123 = por %p121, %p122
      %p125 = scmp.ne.s32.totalorder %s110, %s124
      %p126 = scmp.eq.s32.totalorder %s25, 0
      %p127 = por %p125, %p126
      %s129 = sadd.s32 %s128, 1
      %p132 = scmp.eq.s32.totalorder %s19, 1
      %p133 = scmp.ne.s32.totalorder %s128, %s130
      %p134 = scmp.eq.s32.totalorder %s19, 0
      %p135 = por %p133, %p134
      %p136 = scmp.ne.s32.totalorder %s128, %s130
      %p137 = scmp.eq.s32.totalorder %s24, 1
      %p138 = por %p136, %p137
      %p139 = scmp.ne.s32.totalorder %s130, %s131
      %p140 = scmp.eq.s32.totalorder %s24, 0
      %p141 = por %p139, %p140
      %p142 = scmp.ne.s32.totalorder %s130, %s131
      %p143 = scmp.eq.s32.totalorder %s25, 1
      %p144 = por %p142, %p143
      %p146 = scmp.ne.s32.totalorder %s131, %s145
      %p147 = scmp.eq.s32.totalorder %s25, 0
      %p148 = por %p146, %p147
      %s149 = ssub.s32 %s27, %s34
      %p150 = scmp.eq.s32.totalorder %s149, 0
      %s152 = sadd.s32 %s151, 1
      %s153 = scalar_select %p150, %s151, %s152
      %p156 = pneg %p150
      %p157 = scmp.eq.s32.totalorder %s19, 1
      %p158 = por %p156, %p157
      %p159 = scmp.ne.s32.totalorder %s151, %s154
      %p160 = scmp.eq.s32.totalorder %s19, 0
      %p161 = por %p159, %p160
      %p162 = scmp.ne.s32.totalorder %s151, %s154
      %p163 = scmp.eq.s32.totalorder %s24, 1
      %p164 = por %p162, %p163
      %p165 = scmp.ne.s32.totalorder %s154, %s155
      %p166 = scmp.eq.s32.totalorder %s24, 0
      %p167 = por %p165, %p166
      %p168 = scmp.ne.s32.totalorder %s154, %s155
      %p169 = scmp.eq.s32.totalorder %s25, 1
      %p170 = por %p168, %p169
      %p172 = scmp.ne.s32.totalorder %s155, %s171
      %p173 = scmp.eq.s32.totalorder %s25, 0
      %p174 = por %p172, %p173
      %s175 = ssub.s32 %s27, %s34
      %p176 = scmp.eq.s32.totalorder %s175, 0
      %s178 = sadd.s32 %s177, 1
      %s179 = scalar_select %p176, %s177, %s178
      %p182 = pneg %p176
      %p183 = scmp.eq.s32.totalorder %s19, 1
      %p184 = por %p182, %p183
      %p185 = scmp.ne.s32.totalorder %s177, %s180
      %p186 = scmp.eq.s32.totalorder %s19, 0
      %p187 = por %p185, %p186
      %p188 = scmp.ne.s32.totalorder %s177, %s180
      %p189 = scmp.eq.s32.totalorder %s24, 1
      %p190 = por %p188, %p189
      %p191 = scmp.ne.s32.totalorder %s180, %s181
      %p192 = scmp.eq.s32.totalorder %s24, 0
      %p193 = por %p191, %p192
      %p194 = scmp.ne.s32.totalorder %s180, %s181
      %p195 = scmp.eq.s32.totalorder %s25, 1
      %p196 = por %p194, %p195
      %p198 = scmp.ne.s32.totalorder %s181, %s197
      %p199 = scmp.eq.s32.totalorder %s25, 0
      %p200 = por %p198, %p199
      %s201 = ssub.s32 %s27, %s34
      %p202 = scmp.eq.s32.totalorder %s201, 0
      %s204 = sadd.s32 %s203, 1
      %s205 = scalar_select %p202, %s203, %s204
      %p208 = pneg %p202
      %p209 = scmp.eq.s32.totalorder %s19, 1
      %p210 = por %p208, %p209
      %p211 = scmp.ne.s32.totalorder %s203, %s206
      %p212 = scmp.eq.s32.totalorder %s19, 0
      %p213 = por %p211, %p212
      %p214 = scmp.ne.s32.totalorder %s203, %s206
      %p215 = scmp.eq.s32.totalorder %s24, 1
      %p216 = por %p214, %p215
      %p217 = scmp.ne.s32.totalorder %s206, %s207
      %p218 = scmp.eq.s32.totalorder %s24, 0
      %p219 = por %p217, %p218
      %p220 = scmp.ne.s32.totalorder %s206, %s207
      %p221 = scmp.eq.s32.totalorder %s25, 1
      %p222 = por %p220, %p221
      %p224 = scmp.ne.s32.totalorder %s207, %s223
      %p225 = scmp.eq.s32.totalorder %s25, 0
      %p226 = por %p224, %p225
      %s228 = sadd.s32 %s227, 1
      %p231 = scmp.eq.s32.totalorder %s19, 1
      %p232 = scmp.ne.s32.totalorder %s227, %s229
      %p233 = scmp.eq.s32.totalorder %s19, 0
      %p234 = por %p232, %p233
      %p235 = scmp.ne.s32.totalorder %s227, %s229
      %p236 = scmp.eq.s32.totalorder %s24, 1
      %p237 = por %p235, %p236
      %p238 = scmp.ne.s32.totalorder %s229, %s230
      %p239 = scmp.eq.s32.totalorder %s24, 0
      %p240 = por %p238, %p239
      %p241 = scmp.ne.s32.totalorder %s229, %s230
      %p242 = scmp.eq.s32.totalorder %s25, 1
      %p243 = por %p241, %p242
      %p245 = scmp.ne.s32.totalorder %s230, %s244
      %p246 = scmp.eq.s32.totalorder %s25, 0
      %p247 = por %p245, %p246
      %s248 = ssub.s32 %s26, %s38
      %p249 = scmp.eq.s32.totalorder %s248, 0
      %s251 = sadd.s32 %s250, 1
      %s252 = scalar_select %p249, %s250, %s251
      %p255 = pneg %p249
      %p256 = scmp.eq.s32.totalorder %s19, 1
      %p257 = por %p255, %p256
      %p258 = scmp.ne.s32.totalorder %s250, %s253
      %p259 = scmp.eq.s32.totalorder %s19, 0
      %p260 = por %p258, %p259
      %p261 = scmp.ne.s32.totalorder %s250, %s253
      %p262 = scmp.eq.s32.totalorder %s24, 1
      %p263 = por %p261, %p262
      %p264 = scmp.ne.s32.totalorder %s253, %s254
      %p265 = scmp.eq.s32.totalorder %s24, 0
      %p266 = por %p264, %p265
      %p267 = scmp.ne.s32.totalorder %s253, %s254
      %p268 = scmp.eq.s32.totalorder %s25, 1
      %p269 = por %p267, %p268
      %p271 = scmp.ne.s32.totalorder %s254, %s270
      %p272 = scmp.eq.s32.totalorder %s25, 0
      %p273 = por %p271, %p272
      %s274 = ssub.s32 %s26, %s38
      %p275 = scmp.eq.s32.totalorder %s274, 0
      %s277 = sadd.s32 %s276, 1
      %s278 = scalar_select %p275, %s276, %s277
      %p281 = pneg %p275
      %p282 = scmp.eq.s32.totalorder %s19, 1
      %p283 = por %p281, %p282
      %p284 = scmp.ne.s32.totalorder %s276, %s279
      %p285 = scmp.eq.s32.totalorder %s19, 0
      %p286 = por %p284, %p285
      %p287 = scmp.ne.s32.totalorder %s276, %s279
      %p288 = scmp.eq.s32.totalorder %s24, 1
      %p289 = por %p287, %p288
      %p290 = scmp.ne.s32.totalorder %s279, %s280
      %p291 = scmp.eq.s32.totalorder %s24, 0
      %p292 = por %p290, %p291
      %p293 = scmp.ne.s32.totalorder %s279, %s280
      %p294 = scmp.eq.s32.totalorder %s25, 1
      %p295 = por %p293, %p294
      %p297 = scmp.ne.s32.totalorder %s280, %s296
      %p298 = scmp.eq.s32.totalorder %s25, 0
      %p299 = por %p297, %p298
      %s300 = ssub.s32 %s26, %s38
      %p301 = scmp.eq.s32.totalorder %s300, 0
      %s303 = sadd.s32 %s302, 1
      %s304 = scalar_select %p301, %s302, %s303
      %p307 = pneg %p301
      %p308 = scmp.eq.s32.totalorder %s19, 1
      %p309 = por %p307, %p308
      %p310 = scmp.ne.s32.totalorder %s302, %s305
      %p311 = scmp.eq.s32.totalorder %s19, 0
      %p312 = por %p310, %p311
      %p313 = scmp.ne.s32.totalorder %s302, %s305
      %p314 = scmp.eq.s32.totalorder %s24, 1
      %p315 = por %p313, %p314
      %p316 = scmp.ne.s32.totalorder %s305, %s306
      %p317 = scmp.eq.s32.totalorder %s24, 0
      %p318 = por %p316, %p317
      %p319 = scmp.ne.s32.totalorder %s305, %s306
      %p320 = scmp.eq.s32.totalorder %s25, 1
      %p321 = por %p319, %p320
      %p323 = scmp.ne.s32.totalorder %s306, %s322
      %p324 = scmp.eq.s32.totalorder %s25, 0
      %p325 = por %p323, %p324
      %p326 = scmp.le.s32.totalorder 1, %s19
      %p327 = scmp.lt.s32.totalorder %s19, 3
      %p328 = pnand %p326, %p327
      %p329 = pneg %p328
      // Predicated region
      $region9: #{tpu_custom_call.1} parent=5 // pred_check
        _
      $region10: #{tpu_custom_call.1} parent=5 // pred_check_branch
        %331 = sbr.rel (%p328) target = $region12
      $region11: #{tpu_custom_call.1} parent=5 // pred_region
        %s332 = ssub.s32 %s19, 1
        // Predicated region
        $region13: #{tpu_custom_call.1} parent=11 // pred_check
          %p333 = pneg %p57
        $region14: #{tpu_custom_call.1} parent=11 // pred_check_branch
          %335 = sbr.rel (%p333) target = $region16
        $region15: #{tpu_custom_call.1} parent=11 // pred_region
          %s336 = smul.u32 2, %s28
          %p337 = scmp.lt.s32.totalorder %s336, 1
          %s338 = scalar_select %p337, %s336, 1
          %s339 = smul.addr %s338, 8
          %s340 = scalar_lea.vmem %s0, %s339
          %s341 = smul.u32 2, %s28
        $region16: #{tpu_custom_call.1} parent=11 // pred_fallthru
          _
        // Predicated region
        $region17: #{tpu_custom_call.1} parent=11 // pred_check
          %p342 = pneg %p78
        $region18: #{tpu_custom_call.1} parent=11 // pred_check_branch
          %344 = sbr.rel (%p342) target = $region20
        $region19: #{tpu_custom_call.1} parent=11 // pred_region
          _
        $region20: #{tpu_custom_call.1} parent=11 // pred_fallthru
          _
        // Predicated region
        $region21: #{tpu_custom_call.1} parent=11 // pred_check
          %p345 = pneg %p99
        $region22: #{tpu_custom_call.1} parent=11 // pred_check_branch
          %347 = sbr.rel (%p345) target = $region24
        $region23: #{tpu_custom_call.1} parent=11 // pred_region
          _
        $region24: #{tpu_custom_call.1} parent=11 // pred_fallthru
          _
        // Predicated region
        $region25: #{tpu_custom_call.1} parent=11 // pred_check
          %p348 = pneg %p120
        $region26: #{tpu_custom_call.1} parent=11 // pred_check_branch
          %350 = sbr.rel (%p348) target = $region28
        $region27: #{tpu_custom_call.1} parent=11 // pred_region
          _
        $region28: #{tpu_custom_call.1} parent=11 // pred_fallthru
          _
        // Predicated region
        $region29: #{tpu_custom_call.1} parent=11 // pred_check
          %p351 = pneg %p141
        $region30: #{tpu_custom_call.1} parent=11 // pred_check_branch
          %353 = sbr.rel (%p351) target = $region32
        $region31: #{tpu_custom_call.1} parent=11 // pred_region
          _
        $region32: #{tpu_custom_call.1} parent=11 // pred_fallthru
          _
        // Predicated region
        $region33: #{tpu_custom_call.1} parent=11 // pred_check
          %p354 = pneg %p240
        $region34: #{tpu_custom_call.1} parent=11 // pred_check_branch
          %356 = sbr.rel (%p354) target = $region36
        $region35: #{tpu_custom_call.1} parent=11 // pred_region
          _
        $region36: #{tpu_custom_call.1} parent=11 // pred_fallthru
          _
      $region12: #{tpu_custom_call.1} parent=5 // pred_fallthru
        _
      %p357 = scmp.lt.s32.totalorder %s19, 2
      // Predicated region
      $region37: #{tpu_custom_call.1} parent=5 // pred_check
        %p358 = pneg %p357
      $region38: #{tpu_custom_call.1} parent=5 // pred_check_branch
        %360 = sbr.rel (%p358) target = $region40
      $region39: #{tpu_custom_call.1} parent=5 // pred_region
        // Predicated region
        $region41: #{tpu_custom_call.1} parent=39 // pred_check
          %p361 = pneg %p161
        $region42: #{tpu_custom_call.1} parent=39 // pred_check_branch
          %363 = sbr.rel (%p361) target = $region44
        $region43: #{tpu_custom_call.1} parent=39 // pred_region
          %p364 = scmp.lt.s32.totalorder %s27, 1
          %s365 = scalar_select %p364, %s27, 1
          %s366 = smul.addr %s365, 8
          %s367 = smul.addr %s366, 8
          %s368 = scalar_lea.vmem %s5, %s367
        $region44: #{tpu_custom_call.1} parent=39 // pred_fallthru
          _
        // Predicated region
        $region45: #{tpu_custom_call.1} parent=39 // pred_check
          %p369 = pneg %p187
        $region46: #{tpu_custom_call.1} parent=39 // pred_check_branch
          %371 = sbr.rel (%p369) target = $region48
        $region47: #{tpu_custom_call.1} parent=39 // pred_region
          %p372 = scmp.lt.s32.totalorder %s27, 1
          %s373 = scalar_select %p372, %s27, 1
          %s374 = smul.addr %s373, 4
          %s375 = smul.addr %s374, 8
          %s376 = scalar_lea.vmem %s6, %s375
        $region48: #{tpu_custom_call.1} parent=39 // pred_fallthru
          _
        // Predicated region
        $region49: #{tpu_custom_call.1} parent=39 // pred_check
          %p377 = pneg %p213
        $region50: #{tpu_custom_call.1} parent=39 // pred_check_branch
          %379 = sbr.rel (%p377) target = $region52
        $region51: #{tpu_custom_call.1} parent=39 // pred_region
          %p380 = scmp.lt.s32.totalorder %s27, 1
          %s381 = scalar_select %p380, %s27, 1
          %s382 = smul.addr %s381, 32
          %s383 = smul.addr %s382, 8
          %s384 = scalar_lea.vmem %s7, %s383
        $region52: #{tpu_custom_call.1} parent=39 // pred_fallthru
          _
      $region40: #{tpu_custom_call.1} parent=5 // pred_fallthru
        _
      %p385 = scmp.le.s32.totalorder 1, %s19
      %p386 = scmp.lt.s32.totalorder %s19, 3
      %p387 = pnand %p385, %p386
      %p388 = pneg %p387
      // Predicated region
      $region53: #{tpu_custom_call.1} parent=5 // pred_check
        _
      $region54: #{tpu_custom_call.1} parent=5 // pred_check_branch
        %390 = sbr.rel (%p387) target = $region56
      $region55: #{tpu_custom_call.1} parent=5 // pred_region
        %s391 = ssub.s32 %s19, 1
        %s392 = smul.u32 2, %s28
        %p393 = scmp.lt.s32.totalorder %s392, 1
        %s394 = scalar_select %p393, %s392, 1
        %s395 = smul.addr %s394, 8
        %s396 = scalar_lea.vmem %s0, %s395
        %p397 = pneg %p57
        %p398 = pneg %p54
        %p399 = pneg %p78
        %p400 = pneg %p75
        %p401 = pneg %p99
        %p402 = pneg %p96
        %p403 = pneg %p120
        %p404 = pneg %p117
        %p405 = pneg %p141
        %p406 = pneg %p138
        %p407 = scmp.lt.s32.totalorder %s29, 1
        %s408 = scalar_select %p407, %s29, 1
        %s409 = smul.addr %s408, 8
        %s410 = smul.addr %s409, 8
        %s411 = scalar_lea.vmem %s5, %s410
        %p412 = pneg %p167
        %p413 = pneg %p164
        %p414 = scmp.lt.s32.totalorder %s29, 1
        %s415 = scalar_select %p414, %s29, 1
        %s416 = smul.addr %s415, 4
        %s417 = smul.addr %s416, 8
        %s418 = scalar_lea.vmem %s6, %s417
        %p419 = pneg %p193
        %p420 = pneg %p190
        %p421 = scmp.lt.s32.totalorder %s29, 1
        %s422 = scalar_select %p421, %s29, 1
        %s423 = smul.addr %s422, 32
        %s424 = smul.addr %s423, 8
        %s425 = scalar_lea.vmem %s7, %s424
        %p426 = pneg %p219
        %p427 = pneg %p216
        %p428 = pneg %p240
        %p429 = pneg %p237
        %p430 = pneg %p266
        %p431 = pneg %p263
        %p432 = pneg %p292
        %p433 = pneg %p289
        %s434 = smul.u32 2, %s28
        %p435 = scmp.lt.s32.totalorder %s434, 1
        %s436 = scalar_select %p435, %s434, 1
        %s437 = smul.addr %s436, 8
        %s438 = scalar_lea.vmem %s10, %s437
        %p439 = pneg %p318
        %p440 = pneg %p315
        %s441 = smul.u32 2, %s28
        %p442 = scmp.lt.s32.totalorder %s441, 1
        %s443 = scalar_select %p442, %s441, 1
        %s444 = smul.addr %s443, 8
        %s445 = scalar_lea.vmem %s11, %s444
        %s446 = smul.u32 2, %s28
        %p447 = scmp.lt.s32.totalorder %s446, 1
        %s448 = scalar_select %p447, %s446, 1
        %s449 = smul.addr %s448, 8
        %s450 = scalar_lea.vmem %s0, %s449
        %s451 = smul.u32 2, %s28
        %p452 = scmp.lt.s32.totalorder %s29, 1
        %s453 = scalar_select %p452, %s29, 1
        %s454 = smul.addr %s453, 8
        %s455 = smul.addr %s454, 8
        %s456 = scalar_lea.vmem %s5, %s455
        %p457 = scmp.lt.s32.totalorder %s29, 1
        %s458 = scalar_select %p457, %s29, 1
        %s459 = smul.addr %s458, 4
        %s460 = smul.addr %s459, 8
        %s461 = scalar_lea.vmem %s6, %s460
        %p462 = scmp.lt.s32.totalorder %s29, 1
        %s463 = scalar_select %p462, %s29, 1
        %s464 = smul.addr %s463, 32
        %s465 = smul.addr %s464, 8
        %s466 = scalar_lea.vmem %s7, %s465
        %s467 = smul.u32 2, %s28
        %s468 = smul.u32 2, %s28
        %p469 = scmp.lt.s32.totalorder %s468, 1
        %s470 = scalar_select %p469, %s468, 1
        %s471 = smul.addr %s470, 8
        %s472 = scalar_lea.vmem %s10, %s471
        %s473 = smul.u32 2, %s28
        %s474 = smul.u32 2, %s28
        %p475 = scmp.lt.s32.totalorder %s474, 1
        %s476 = scalar_select %p475, %s474, 1
        %s477 = smul.addr %s476, 8
        %s478 = scalar_lea.vmem %s11, %s477
        %s479 = smul.u32 2, %s28
        %v480 = vld [vmem:[%s450] sm:$0xff]
        %v481 = vld [vmem:[%s450 + $0x8] sm:$0xff]
        %p482 = scmp.eq.s32.totalorder %s29, 0
        // Predicated region
        $region57: #{tpu_custom_call.1} parent=55 // pred_check
          %p483 = pneg %p482
        $region58: #{tpu_custom_call.1} parent=55 // pred_check_branch
          %485 = sbr.rel (%p483) target = $region60
        $region59: #{tpu_custom_call.1} parent=55 // pred_region
          %v486 = vld [vmem:[%s1] sm:$0xff]
          %v487 = vld [vmem:[%s1 + $0x8] sm:$0xff]
          %v488 = vld [vmem:[%s1 + $0x10] sm:$0xff]
          %v489 = vld [vmem:[%s1 + $0x18] sm:$0xff]
          %v490 = vld [vmem:[%s2] sm:$0x1]
          %v492 = vperm.slane %v490, 0
          %vm494 = vcmask 261120
          %v496 = vsel %vm494, %v480, 0
          %v499 = vsel %vm494, %v481, 0
          %501 = vmatpush.msra.mxu0 0.0
          %502 = vmatpush.msra.mxu0 0.0
          %503 = vmatpush.msra.mxu0 0.0
          %504 = vmatpush.msra.mxu0 0.0
          %505 = vmatpush.msra.mxu0 0.0
          %506 = vmatpush.msra.mxu0 0.0
          %507 = vmatpush.msra.mxu0 0.0
          %508 = vmatpush.msra.mxu0 0.0
          %509 = vmatpush.msra.mxu0 0.0
          %510 = vmatpush.msra.mxu0 0.0
          %511 = vmatpush.msra.mxu0 0.0
          %512 = vmatpush.msra.mxu0 0.0
          %513 = vmatpush.msra.mxu0 %v489
          %514 = vmatpush.msra.mxu0 %v488
          %515 = vmatpush.msra.mxu0 %v487
          %516 = vmatpush.msra.mxu0 %v486
          %517 = vmatmul.f32.gmra.mxu0 %v496
          %v518 = vpop.f32.mrf.mxu0
          %v519 = vadd.f32 %v492, %v518
          %520 = vmatmul.f32.gmra.mxu0 %v499
          %v521 = vpop.f32.mrf.mxu0
          %v522 = vadd.f32 %v492, %v521
          %523 = vdwg.mxu0
          %vm524 = vcmask 15360
          %v525 = vsel %vm524, %v519, -inf
          %526 = vmax.xlane.f32.xlu0 %v525
          %v527 = vpop.xlane.xlu0 %526
          %v528 = vsel %vm524, %v522, -inf
          %529 = vmax.xlane.f32.xlu0 %v528
          %v530 = vpop.xlane.xlu0 %529
          %v531 = vsub.f32 %v519, %v527
          %v532 = vsub.f32 %v522, %v530
          %v533 = vmul.f32 %v531, 1.442695
          %v534 = vpow.pop %v533
          %v535 = vmul.f32 %v532, 1.442695
          %v536 = vpow.pop %v535
          %v537 = vsel %vm524, %v534, 0.0
          %538 = vadd.xlane.f32.xlu0 %v537
          %v539 = vpop.xlane.xlu0 %538
          %v540 = vsel %vm524, %v536, 0.0
          %541 = vadd.xlane.f32.xlu0 %v540
          %v542 = vpop.xlane.xlu0 %541
          %v543 = vrcp.pop %v539
          %v544 = vmul.f32 %v539, %v543
          %v545 = vsub.f32 1.0, %v544
          %v546 = vmul.f32 %v543, %v545
          %v547 = vadd.f32 %v543, %v546
          %vm548 = vweird.f32 %v539
          %vm549 = vweird.f32 %v543
          %vm550 = vmor %vm548, %vm549
          %v551 = vsel %vm550, %v543, %v547
          %v552 = vand.u32 2147483647, %v539
          %vm553 = vcmp.eq.f32.partialorder %v552, 8.507059e+37
          %v554 = vand.u32 %v539, 2147483648
          %v555 = vor.u32 1.1754944e-38, %v554
          %v556 = vsel %vm553, %v555, %v551
          %v557 = vmul.f32 %v534, %v556
          %v558 = vrcp.pop %v542
          %v559 = vmul.f32 %v542, %v558
          %v560 = vsub.f32 1.0, %v559
          %v561 = vmul.f32 %v558, %v560
          %v562 = vadd.f32 %v558, %v561
          %vm563 = vweird.f32 %v542
          %vm564 = vweird.f32 %v558
          %vm565 = vmor %vm563, %vm564
          %v566 = vsel %vm565, %v558, %v562
          %v567 = vand.u32 2147483647, %v542
          %vm568 = vcmp.eq.f32.partialorder %v567, 8.507059e+37
          %v569 = vand.u32 %v542, 2147483648
          %v570 = vor.u32 1.1754944e-38, %v569
          %v571 = vsel %vm568, %v570, %v566
          %v572 = vmul.f32 %v536, %v571
          %v573 = vlaneseq
          %v574 = vand.u32 %v573, 127
          %vm575 = vcmp.eq.f32.partialorder %v519, %v527
          %vm576 = vcmp.eq.f32.partialorder %v522, %v530
          %v577 = vsel %vm575, %v574, 2
          %v578 = vsel %vm576, %v574, 2
          %v579 = vsel %vm524, %v577, 2147483647
          %v580 = vand.u32 %v579, 65535
          %v581 = vshra.s32 %v579, 16
          %v582 = vcvt.s32.f32 %v580
          %v583 = vcvt.s32.f32 %v581
          %584 = vmin.xlane.f32.xlu0 %v583
          %v585 = vpop.xlane.xlu0 %584
          %vm586 = vcmp.eq.f32.partialorder %v583, %v585
          %v587 = vsel %vm586, %v582, inf
          %588 = vmin.xlane.f32.xlu0 %v587
          %v589 = vpop.xlane.xlu0 %588
          %v590 = vcvt.f32.s32 %v589
          %v591 = vcvt.f32.s32 %v585
          %v592 = vshll.u32 %v591, 16
          %v593 = vadd.s32 %v592, %v590
          %v594 = vsel %vm524, %v578, 2147483647
          %v595 = vand.u32 %v594, 65535
          %v596 = vshra.s32 %v594, 16
          %v597 = vcvt.s32.f32 %v595
          %v598 = vcvt.s32.f32 %v596
          %599 = vmin.xlane.f32.xlu0 %v598
          %v600 = vpop.xlane.xlu0 %599
          %vm601 = vcmp.eq.f32.partialorder %v598, %v600
          %v602 = vsel %vm601, %v597, inf
          %603 = vmin.xlane.f32.xlu0 %v602
          %v604 = vpop.xlane.xlu0 %603
          %v605 = vcvt.f32.s32 %v604
          %v606 = vcvt.f32.s32 %v600
          %v607 = vshll.u32 %v606, 16
          %v608 = vadd.s32 %v607, %v605
          %609 = vst.msk [vmem:[%s472] sm:$0xff] %vm524, %v557
          %610 = vst.msk [vmem:[%s472 + $0x8] sm:$0xff] %vm524, %v572
          %vm611 = vcmp.eq.s32.totalorder %v574, %v593
          %vm612 = vcmp.eq.s32.totalorder %v574, %v608
          %v613 = vsel %vm611, 1, 0
          %v614 = vsel %vm612, 1, 0
          %v615 = vcvt.s32.f32 %v613
          %v616 = vcvt.s32.f32 %v614
          %617 = vst.msk [vmem:[%s478] sm:$0xff] %vm524, %v615
          %618 = vst.msk [vmem:[%s478 + $0x8] sm:$0xff] %vm524, %v616
          %v619 = vld [vmem:[%s3] sm:$0x3]
          %v621 = vsel %vm524, %v557, 0
          %v624 = vsel %vm524, %v572, 0
          %vm626 = vcmask 1041408
          %v628 = vsel %vm626, %v619, 0
          %630 = vmatpush.msra.mxu0 0.0
          %631 = vmatpush.msra.mxu0 0.0
          %632 = vmatpush.msra.mxu0 0.0
          %633 = vmatpush.msra.mxu0 0.0
          %634 = vmatpush.msra.mxu0 0.0
          %635 = vmatpush.msra.mxu0 0.0
          %636 = vmatpush.msra.mxu0 0.0
          %637 = vmatpush.msra.mxu0 0.0
          %638 = vmatpush.msra.mxu0 0.0
          %639 = vmatpush.msra.mxu0 0.0
          %640 = vmatpush.msra.mxu0 0.0
          %641 = vmatpush.msra.mxu0 0.0
          %642 = vmatpush.msra.mxu0 0.0
          %643 = vmatpush.msra.mxu0 0.0
          %644 = vmatpush.msra.mxu0 0.0
          %645 = vmatpush.msra.mxu0 %v628
          %646 = vmatmul.f32.gmra.mxu0 %v621
          %v647 = vpop.f32.mrf.mxu0
          %v648 = vadd.f32 0.0, %v647
          %649 = vmatmul.f32.gmra.mxu0 %v624
          %v650 = vpop.f32.mrf.mxu0
          %v651 = vadd.f32 0.0, %v650
          %652 = vdwg.mxu0
          %vm653 = vcmask 64512
          %654 = vst.msk [vmem:[#allocation4] sm:$0xff] %vm653, %v648
          %655 = vst.msk [vmem:[#allocation4 + $0x8] sm:$0xff] %vm653, %v651
          %v656 = vld [vmem:[%s4] sm:$0xff]
          %v657 = vld [vmem:[%s4 + $0x8] sm:$0xff]
          %v658 = vld [vmem:[%s4 + $0x10] sm:$0xff]
          %v659 = vld [vmem:[%s4 + $0x18] sm:$0xff]
          %660 = vmatpush.msra.mxu0 0.0
          %661 = vmatpush.msra.mxu0 0.0
          %662 = vmatpush.msra.mxu0 0.0
          %663 = vmatpush.msra.mxu0 0.0
          %664 = vmatpush.msra.mxu0 0.0
          %665 = vmatpush.msra.mxu0 0.0
          %666 = vmatpush.msra.mxu0 0.0
          %667 = vmatpush.msra.mxu0 0.0
          %668 = vmatpush.msra.mxu0 0.0
          %669 = vmatpush.msra.mxu0 0.0
          %670 = vmatpush.msra.mxu0 0.0
          %671 = vmatpush.msra.mxu0 0.0
          %672 = vmatpush.msra.mxu0 %v659
          %673 = vmatpush.msra.mxu0 %v658
          %674 = vmatpush.msra.mxu0 %v657
          %675 = vmatpush.msra.mxu0 %v656
          %676 = vmatmul.f32.gmra.mxu0 %v496
          %v677 = vpop.f32.mrf.mxu0
          %v678 = vadd.f32 0.0, %v677
          %679 = vmatmul.f32.gmra.mxu0 %v499
          %v680 = vpop.f32.mrf.mxu0
          %v681 = vadd.f32 0.0, %v680
          %682 = vdwg.mxu0
          %v683 = vmul.f32 %v678, %v648
          %v684 = vmul.f32 %v681, %v651
          %vm685 = vcmask 130048
          %686 = vst.msk [vmem:[#allocation3] sm:$0xff] %vm685, %v683
          %687 = vst.msk [vmem:[#allocation3 + $0x8] sm:$0xff] %vm685, %v684
          %688 = vst [vmem:[#allocation2] sm:$0xff] 0.0
          %689 = vst.msk [vmem:[#allocation2 + $0x8] sm:$0xff] %vm494, 0.0
          %690 = vst [vmem:[#allocation2 + $0x10] sm:$0xff] 0.0
          %691 = vst.msk [vmem:[#allocation2 + $0x18] sm:$0xff] %vm494, 0.0
        $region60: #{tpu_custom_call.1} parent=55 // pred_fallthru
          _
        %v692 = vld [vmem:[%s456] sm:$0xff]
        %v693 = vld [vmem:[%s456 + $0x8] sm:$0xff]
        %v694 = vld [vmem:[%s456 + $0x10] sm:$0xff]
        %v695 = vld [vmem:[%s456 + $0x18] sm:$0xff]
        %v696 = vld [vmem:[%s456 + $0x20] sm:$0xff]
        %v697 = vld [vmem:[%s456 + $0x28] sm:$0xff]
        %v698 = vld [vmem:[%s456 + $0x30] sm:$0xff]
        %v699 = vld [vmem:[%s456 + $0x38] sm:$0xff]
        %v700 = vld [vmem:[#allocation3] sm:$0xff]
        %v701 = vld [vmem:[#allocation3 + $0x8] sm:$0xff]
        %v702 = vld [vmem:[%s461] sm:$0xff]
        %v703 = vld [vmem:[%s461 + $0x8] sm:$0xff]
        %v704 = vld [vmem:[%s461 + $0x10] sm:$0xff]
        %v705 = vld [vmem:[%s461 + $0x18] sm:$0xff]
        %vm706 = vcmask 130048
        %v708 = vsel %vm706, %v700, 0
        %v711 = vsel %vm706, %v701, 0
        %713 = vmatpush.msra.mxu0 0.0
        %714 = vmatpush.msra.mxu0 0.0
        %715 = vmatpush.msra.mxu0 0.0
        %716 = vmatpush.msra.mxu0 0.0
        %717 = vmatpush.msra.mxu0 0.0
        %718 = vmatpush.msra.mxu0 0.0
        %719 = vmatpush.msra.mxu0 0.0
        %720 = vmatpush.msra.mxu0 0.0
        %721 = vmatpush.msra.mxu0 0.0
        %722 = vmatpush.msra.mxu0 0.0
        %723 = vmatpush.msra.mxu0 0.0
        %724 = vmatpush.msra.mxu0 0.0
        %725 = vmatpush.msra.mxu0 0.0
        %726 = vmatpush.msra.mxu0 0.0
        %727 = vmatpush.msra.mxu0 %v704
        %728 = vmatpush.msra.mxu0 %v702
        %729 = vmatmul.f32.gmra.mxu0 %v708
        %v730 = vpop.f32.mrf.mxu0
        %v731 = vadd.f32 0.0, %v730
        %732 = vmatmul.f32.gmra.mxu0 %v711
        %v733 = vpop.f32.mrf.mxu0
        %v734 = vadd.f32 0.0, %v733
        %735 = vdwg.mxu0
        %736 = vmatpush.msra.mxu0 0.0
        %737 = vmatpush.msra.mxu0 0.0
        %738 = vmatpush.msra.mxu0 0.0
        %739 = vmatpush.msra.mxu0 0.0
        %740 = vmatpush.msra.mxu0 0.0
        %741 = vmatpush.msra.mxu0 0.0
        %742 = vmatpush.msra.mxu0 0.0
        %743 = vmatpush.msra.mxu0 0.0
        %744 = vmatpush.msra.mxu0 0.0
        %745 = vmatpush.msra.mxu0 0.0
        %746 = vmatpush.msra.mxu0 0.0
        %747 = vmatpush.msra.mxu0 0.0
        %748 = vmatpush.msra.mxu0 0.0
        %749 = vmatpush.msra.mxu0 0.0
        %750 = vmatpush.msra.mxu0 %v705
        %751 = vmatpush.msra.mxu0 %v703
        %752 = vmatmul.f32.gmra.mxu0 %v708
        %v753 = vpop.f32.mrf.mxu0
        %v754 = vadd.f32 0.0, %v753
        %755 = vmatmul.f32.gmra.mxu0 %v711
        %v756 = vpop.f32.mrf.mxu0
        %v757 = vadd.f32 0.0, %v756
        %758 = vdwg.mxu0
        %vm759 = vcmask 261120
        %v761 = vsel %vm759, %v480, 0
        %v764 = vsel %vm759, %v481, 0
        %766 = vmatpush.msra.mxu0 0.0
        %767 = vmatpush.msra.mxu0 0.0
        %768 = vmatpush.msra.mxu0 0.0
        %769 = vmatpush.msra.mxu0 0.0
        %770 = vmatpush.msra.mxu0 0.0
        %771 = vmatpush.msra.mxu0 0.0
        %772 = vmatpush.msra.mxu0 0.0
        %773 = vmatpush.msra.mxu0 0.0
        %774 = vmatpush.msra.mxu0 0.0
        %775 = vmatpush.msra.mxu0 0.0
        %776 = vmatpush.msra.mxu0 0.0
        %777 = vmatpush.msra.mxu0 0.0
        %778 = vmatpush.msra.mxu0 %v698
        %779 = vmatpush.msra.mxu0 %v696
        %780 = vmatpush.msra.mxu0 %v694
        %781 = vmatpush.msra.mxu0 %v692
        %782 = vmatmul.f32.gmra.mxu0 %v761
        %v783 = vpop.f32.mrf.mxu0
        %v784 = vadd.f32 %v731, %v783
        %785 = vmatmul.f32.gmra.mxu0 %v764
        %v786 = vpop.f32.mrf.mxu0
        %v787 = vadd.f32 %v734, %v786
        %788 = vdwg.mxu0
        %789 = vmatpush.msra.mxu0 0.0
        %790 = vmatpush.msra.mxu0 0.0
        %791 = vmatpush.msra.mxu0 0.0
        %792 = vmatpush.msra.mxu0 0.0
        %793 = vmatpush.msra.mxu0 0.0
        %794 = vmatpush.msra.mxu0 0.0
        %795 = vmatpush.msra.mxu0 0.0
        %796 = vmatpush.msra.mxu0 0.0
        %797 = vmatpush.msra.mxu0 0.0
        %798 = vmatpush.msra.mxu0 0.0
        %799 = vmatpush.msra.mxu0 0.0
        %800 = vmatpush.msra.mxu0 0.0
        %801 = vmatpush.msra.mxu0 %v699
        %802 = vmatpush.msra.mxu0 %v697
        %803 = vmatpush.msra.mxu0 %v695
        %804 = vmatpush.msra.mxu0 %v693
        %805 = vmatmul.f32.gmra.mxu0 %v761
        %v806 = vpop.f32.mrf.mxu0
        %v807 = vadd.f32 %v754, %v806
        %808 = vmatmul.f32.gmra.mxu0 %v764
        %v809 = vpop.f32.mrf.mxu0
        %v810 = vadd.f32 %v757, %v809
        %811 = vdwg.mxu0
        %v812 = vxor.u32 %v784, 2147483648
        %v813 = vxor.u32 %v787, 2147483648
        %v814 = vmul.f32 %v812, 1.442695
        %v815 = vpow.pop %v814
        %v816 = vmul.f32 %v813, 1.442695
        %v817 = vpow.pop %v816
        %v818 = vadd.f32 %v815, 1.0
        %v819 = vadd.f32 %v817, 1.0
        %v820 = vrcp.pop %v818
        %v821 = vmul.f32 %v818, %v820
        %v822 = vsub.f32 1.0, %v821
        %v823 = vmul.f32 %v820, %v822
        %v824 = vadd.f32 %v820, %v823
        %vm825 = vweird.f32 %v818
        %vm826 = vweird.f32 %v820
        %vm827 = vmor %vm825, %vm826
        %v828 = vsel %vm827, %v820, %v824
        %v829 = vand.u32 2147483647, %v818
        %vm830 = vcmp.eq.f32.partialorder %v829, 8.507059e+37
        %v831 = vand.u32 %v818, 2147483648
        %v832 = vor.u32 1.1754944e-38, %v831
        %v833 = vsel %vm830, %v832, %v828
        %v834 = vmul.f32 1.0, %v833
        %v835 = vrcp.pop %v819
        %v836 = vmul.f32 %v819, %v835
        %v837 = vsub.f32 1.0, %v836
        %v838 = vmul.f32 %v835, %v837
        %v839 = vadd.f32 %v835, %v838
        %vm840 = vweird.f32 %v819
        %vm841 = vweird.f32 %v835
        %vm842 = vmor %vm840, %vm841
        %v843 = vsel %vm842, %v835, %v839
        %v844 = vand.u32 2147483647, %v819
        %vm845 = vcmp.eq.f32.partialorder %v844, 8.507059e+37
        %v846 = vand.u32 %v819, 2147483648
        %v847 = vor.u32 1.1754944e-38, %v846
        %v848 = vsel %vm845, %v847, %v843
        %v849 = vmul.f32 1.0, %v848
        %v850 = vmul.f32 %v784, %v834
        %v851 = vmul.f32 %v787, %v849
        %v852 = vmul.f32 %v850, %v807
        %v853 = vmul.f32 %v851, %v810
        %v854 = vld [vmem:[#allocation2] sm:$0xff]
        %v855 = vld [vmem:[#allocation2 + $0x8] sm:$0xff]
        %v856 = vld [vmem:[#allocation2 + $0x10] sm:$0xff]
        %v857 = vld [vmem:[#allocation2 + $0x18] sm:$0xff]
        %v858 = vld [vmem:[%s466] sm:$0xff]
        %v859 = vld [vmem:[%s466 + $0x8] sm:$0xff]
        %v860 = vld [vmem:[%s466 + $0x10] sm:$0xff]
        %v861 = vld [vmem:[%s466 + $0x18] sm:$0xff]
        %v862 = vld [vmem:[%s466 + $0x20] sm:$0xff]
        %v863 = vld [vmem:[%s466 + $0x28] sm:$0xff]
        %v864 = vld [vmem:[%s466 + $0x30] sm:$0xff]
        %v865 = vld [vmem:[%s466 + $0x38] sm:$0xff]
        %v866 = vld [vmem:[%s466 + $0x40] sm:$0xff]
        %v867 = vld [vmem:[%s466 + $0x48] sm:$0xff]
        %v868 = vld [vmem:[%s466 + $0x50] sm:$0xff]
        %v869 = vld [vmem:[%s466 + $0x58] sm:$0xff]
        %v870 = vld [vmem:[%s466 + $0x60] sm:$0xff]
        %v871 = vld [vmem:[%s466 + $0x68] sm:$0xff]
        %v872 = vld [vmem:[%s466 + $0x70] sm:$0xff]
        %v873 = vld [vmem:[%s466 + $0x78] sm:$0xff]
        %v874 = vld [vmem:[%s466 + $0x80] sm:$0xff]
        %v875 = vld [vmem:[%s466 + $0x88] sm:$0xff]
        %v876 = vld [vmem:[%s466 + $0x90] sm:$0xff]
        %v877 = vld [vmem:[%s466 + $0x98] sm:$0xff]
        %v878 = vld [vmem:[%s466 + $0xa0] sm:$0xff]
        %v879 = vld [vmem:[%s466 + $0xa8] sm:$0xff]
        %v880 = vld [vmem:[%s466 + $0xb0] sm:$0xff]
        %v881 = vld [vmem:[%s466 + $0xb8] sm:$0xff]
        %v882 = vld [vmem:[%s466 + $0xc0] sm:$0xff]
        %v883 = vld [vmem:[%s466 + $0xc8] sm:$0xff]
        %v884 = vld [vmem:[%s466 + $0xd0] sm:$0xff]
        %v885 = vld [vmem:[%s466 + $0xd8] sm:$0xff]
        %v886 = vld [vmem:[%s466 + $0xe0] sm:$0xff]
        %v887 = vld [vmem:[%s466 + $0xe8] sm:$0xff]
        %v888 = vld [vmem:[%s466 + $0xf0] sm:$0xff]
        %v889 = vld [vmem:[%s466 + $0xf8] sm:$0xff]
        %890 = vmatpush.msra.mxu0 %v888
        %891 = vmatpush.msra.mxu0 %v886
        %892 = vmatpush.msra.mxu0 %v884
        %893 = vmatpush.msra.mxu0 %v882
        %894 = vmatpush.msra.mxu0 %v880
        %895 = vmatpush.msra.mxu0 %v878
        %896 = vmatpush.msra.mxu0 %v876
        %897 = vmatpush.msra.mxu0 %v874
        %898 = vmatpush.msra.mxu0 %v872
        %899 = vmatpush.msra.mxu0 %v870
        %900 = vmatpush.msra.mxu0 %v868
        %901 = vmatpush.msra.mxu0 %v866
        %902 = vmatpush.msra.mxu0 %v864
        %903 = vmatpush.msra.mxu0 %v862
        %904 = vmatpush.msra.mxu0 %v860
        %905 = vmatpush.msra.mxu0 %v858
        %906 = vmatmul.f32.gmra.mxu0 %v852
        %v907 = vpop.f32.mrf.mxu0
        %v908 = vadd.f32 0.0, %v907
        %909 = vmatmul.f32.gmra.mxu0 %v853
        %v910 = vpop.f32.mrf.mxu0
        %v911 = vadd.f32 0.0, %v910
        %912 = vdwg.mxu0
        %913 = vmatpush.msra.mxu0 %v889
        %914 = vmatpush.msra.mxu0 %v887
        %915 = vmatpush.msra.mxu0 %v885
        %916 = vmatpush.msra.mxu0 %v883
        %917 = vmatpush.msra.mxu0 %v881
        %918 = vmatpush.msra.mxu0 %v879
        %919 = vmatpush.msra.mxu0 %v877
        %920 = vmatpush.msra.mxu0 %v875
        %921 = vmatpush.msra.mxu0 %v873
        %922 = vmatpush.msra.mxu0 %v871
        %923 = vmatpush.msra.mxu0 %v869
        %924 = vmatpush.msra.mxu0 %v867
        %925 = vmatpush.msra.mxu0 %v865
        %926 = vmatpush.msra.mxu0 %v863
        %927 = vmatpush.msra.mxu0 %v861
        %928 = vmatpush.msra.mxu0 %v859
        %929 = vmatmul.f32.gmra.mxu0 %v852
        %v930 = vpop.f32.mrf.mxu0
        %v931 = vadd.f32 0.0, %v930
        %932 = vmatmul.f32.gmra.mxu0 %v853
        %v933 = vpop.f32.mrf.mxu0
        %v934 = vadd.f32 0.0, %v933
        %935 = vdwg.mxu0
        %v936 = vadd.f32 %v854, %v908
        %v937 = vadd.f32 %v855, %v931
        %v938 = vadd.f32 %v856, %v911
        %v939 = vadd.f32 %v857, %v934
        %940 = vst [vmem:[#allocation2] sm:$0xff] %v936
        %941 = vst.msk [vmem:[#allocation2 + $0x8] sm:$0xff] %vm759, %v937
        %942 = vst [vmem:[#allocation2 + $0x10] sm:$0xff] %v938
        %943 = vst.msk [vmem:[#allocation2 + $0x18] sm:$0xff] %vm759, %v939
        %p944 = scmp.eq.s32.totalorder %s29, 1
        // Predicated region
        $region61: #{tpu_custom_call.1} parent=55 // pred_check
          %p945 = pneg %p944
        $region62: #{tpu_custom_call.1} parent=55 // pred_check_branch
          %947 = sbr.rel (%p945) target = $region64
        $region63: #{tpu_custom_call.1} parent=55 // pred_region
          %v948 = vld [vmem:[#allocation2] sm:$0xff]
          %v949 = vld [vmem:[#allocation2 + $0x10] sm:$0xff]
          %v950 = vld [vmem:[#allocation4] sm:$0xff]
          %v951 = vld [vmem:[#allocation4 + $0x8] sm:$0xff]
          %954 = vrot.lane.b32.xlu0 %v950, 32
          %v955 = vpop.permute.xlu0 %954
          %956 = vrot.lane.b32.xlu0 %v951, 32
          %v957 = vpop.permute.xlu0 %956
          %v960 = vmul.f32 %v948, %v955
          %v961 = vmul.f32 %v949, %v957
          %v962 = vld [vmem:[%s8] sm:$0xff]
          %965 = vrot.lane.b32.xlu0 %v960, 96
          %v966 = vpop.permute.xlu0 %965
          %967 = vrot.lane.b32.xlu0 %v961, 96
          %v968 = vpop.permute.xlu0 %967
          %vm969 = vcmask 64512
          %v970 = vsel %vm969, %v966, 0
          %v972 = vsel %vm969, %v968, 0
          %974 = vmatpush.msra.mxu0 0.0
          %975 = vmatpush.msra.mxu0 0.0
          %976 = vmatpush.msra.mxu0 0.0
          %977 = vmatpush.msra.mxu0 0.0
          %978 = vmatpush.msra.mxu0 0.0
          %979 = vmatpush.msra.mxu0 0.0
          %980 = vmatpush.msra.mxu0 0.0
          %981 = vmatpush.msra.mxu0 0.0
          %982 = vmatpush.msra.mxu0 0.0
          %983 = vmatpush.msra.mxu0 0.0
          %984 = vmatpush.msra.mxu0 0.0
          %985 = vmatpush.msra.mxu0 0.0
          %986 = vmatpush.msra.mxu0 0.0
          %987 = vmatpush.msra.mxu0 0.0
          %988 = vmatpush.msra.mxu0 0.0
          %989 = vmatpush.msra.mxu0 %v962
          %990 = vmatmul.f32.gmra.mxu0 %v970
          %v991 = vpop.f32.mrf.mxu0
          %v992 = vadd.f32 0.0, %v991
          %993 = vmatmul.f32.gmra.mxu0 %v972
          %v994 = vpop.f32.mrf.mxu0
          %v995 = vadd.f32 0.0, %v994
          %996 = vdwg.mxu0
          %v997 = vadd.f32 %v948, %v992
          %v998 = vadd.f32 %v949, %v995
          %999 = vst.msk [vmem:[#allocation5] sm:$0xff] %vm759, %v997
          %1000 = vst.msk [vmem:[#allocation5 + $0x8] sm:$0xff] %vm759, %v998
        $region64: #{tpu_custom_call.1} parent=55 // pred_fallthru
          _
        %s1001 = smul.u32 2, %s28
        %p1002 = scmp.lt.s32.totalorder %s1001, 1
        %s1003 = scalar_select %p1002, %s1001, 1
        %s1004 = smul.addr %s1003, 8
        %s1005 = scalar_lea.vmem %s10, %s1004
        %s1006 = smul.u32 2, %s28
        %p1007 = scmp.lt.s32.totalorder %s1006, 1
        %s1008 = scalar_select %p1007, %s1006, 1
        %s1009 = smul.addr %s1008, 8
        %s1010 = scalar_lea.vmem %s11, %s1009
        // Predicated region
        $region65: #{tpu_custom_call.1} parent=55 // pred_check
          %p1011 = pneg %p263
        $region66: #{tpu_custom_call.1} parent=55 // pred_check_branch
          %1013 = sbr.rel (%p1011) target = $region68
        $region67: #{tpu_custom_call.1} parent=55 // pred_region
          %s1014 = smul.u32 2, %s28
          %1016 = vsyncadd [#allocation6], 0
          %s1017 = smul.addr %s1014, 8
          %s1018 = scalar_lea.hbm %s9, %s1017
          %s1019 = sshll.u32 [#allocation5], 4
          %s1020 = int_to_ptr.vmem [resolvable:$true] %s1019
          %s1021 = sshll.u32 %s1018, 4
          %s1022 = int_to_ptr.hbm [resolvable:$true] %s1021
          %1027 = dma.vmem_to_hbm [thread:$0]  %s1020, 256, %s1022, [#allocation6], 128, 128, 8
        $region68: #{tpu_custom_call.1} parent=55 // pred_fallthru
          _
        // Predicated region
        $region69: #{tpu_custom_call.1} parent=55 // pred_check
          %p1028 = pneg %p289
        $region70: #{tpu_custom_call.1} parent=55 // pred_check_branch
          %1030 = sbr.rel (%p1028) target = $region72
        $region71: #{tpu_custom_call.1} parent=55 // pred_region
          %s1031 = smul.u32 2, %s28
        $region72: #{tpu_custom_call.1} parent=55 // pred_fallthru
          _
        // Predicated region
        $region73: #{tpu_custom_call.1} parent=55 // pred_check
          %p1032 = pneg %p315
        $region74: #{tpu_custom_call.1} parent=55 // pred_check_branch
          %1034 = sbr.rel (%p1032) target = $region76
        $region75: #{tpu_custom_call.1} parent=55 // pred_region
          %s1035 = smul.u32 2, %s28
        $region76: #{tpu_custom_call.1} parent=55 // pred_fallthru
          _
        // Predicated region
        $region77: #{tpu_custom_call.1} parent=55 // pred_check
          %p1036 = pneg %p263
        $region78: #{tpu_custom_call.1} parent=55 // pred_check_branch
          %1038 = sbr.rel (%p1036) target = $region80
        $region79: #{tpu_custom_call.1} parent=55 // pred_region
          %1040 = dma.done [#allocation6], 256
        $region80: #{tpu_custom_call.1} parent=55 // pred_fallthru
          _
        // Predicated region
        $region81: #{tpu_custom_call.1} parent=55 // pred_check
          %p1041 = pneg %p289
        $region82: #{tpu_custom_call.1} parent=55 // pred_check_branch
          %1043 = sbr.rel (%p1041) target = $region84
        $region83: #{tpu_custom_call.1} parent=55 // pred_region
          %s1044 = smul.u32 2, %s28
          %p1045 = scmp.lt.s32.totalorder %s1044, 1
          %s1046 = scalar_select %p1045, %s1044, 1
          %s1047 = smul.addr %s1046, 8
          %s1048 = scalar_lea.vmem %s10, %s1047
        $region84: #{tpu_custom_call.1} parent=55 // pred_fallthru
          _
        // Predicated region
        $region85: #{tpu_custom_call.1} parent=55 // pred_check
          %p1049 = pneg %p315
        $region86: #{tpu_custom_call.1} parent=55 // pred_check_branch
          %1051 = sbr.rel (%p1049) target = $region88
        $region87: #{tpu_custom_call.1} parent=55 // pred_region
          %s1052 = smul.u32 2, %s28
          %p1053 = scmp.lt.s32.totalorder %s1052, 1
          %s1054 = scalar_select %p1053, %s1052, 1
          %s1055 = smul.addr %s1054, 8
          %s1056 = scalar_lea.vmem %s11, %s1055
        $region88: #{tpu_custom_call.1} parent=55 // pred_fallthru
          _
      $region56: #{tpu_custom_call.1} parent=5 // pred_fallthru
        _
      %p1057 = scmp.le.s32.totalorder 2, %s19
      // Predicated region
      $region89: #{tpu_custom_call.1} parent=5 // pred_check
        %p1058 = pneg %p1057
      $region90: #{tpu_custom_call.1} parent=5 // pred_check_branch
        %1060 = sbr.rel (%p1058) target = $region92
      $region91: #{tpu_custom_call.1} parent=5 // pred_region
        %s1061 = ssub.s32 %s19, 2
      $region92: #{tpu_custom_call.1} parent=5 // pred_fallthru
        _
    $region6: #{tpu_custom_call.1} parent=1 // loop_footer
      %s23 = sadd.s32 1, %s19
    $region7: #{tpu_custom_call.1} parent=1 // loop_footer_branch
      %18 = sbr.rel target = $region3
    $region8: #{tpu_custom_call.1} parent=1 // loop_exit
      _
    %1062 = vsyncpa [#allocation6], 1
    %s1063 = scalar_lea.sflag [#allocation6], 1
    %1064 = vsyncpa %s1063, 1

</llo_original>
